<compile_context>
chip_gen: v5e
topology: v5e:2x2
jax: 0.10.0
libtpu: 0.0.40
codegen_flags: <defaults>
</compile_context>

<pallas_src>
import functools

import jax
import jax.numpy as jnp
from jax.experimental import pallas as pl
from jax.experimental.pallas import tpu as pltpu

BN_EPS = 1e-5
LANE = 128
VMEM_LIMIT = 32 * 1024 * 1024   # <= physical VMEM on every generation (v5e..v7x)


def _round_up(n, m):
    return (n + m - 1) // m * m


def _pick_block_b(batch, cp, op, block_b):
    """Batch tile: sublane-aligned divisor of B whose double-buffered working set
    (weights + in/out activation tiles) fits comfortably inside the VMEM budget.
    Falls back to the full batch (always a legal full-array block)."""
    if block_b is not None and batch % block_b == 0 and (block_b % 8 == 0 or block_b == batch):
        return block_b
    weight_bytes = 2 * max(cp * cp, cp * op) * 2             # bf16, double-buffered
    for cand in (1024, 512, 256, 128, 64, 32, 16, 8):
        if batch % cand:
            continue
        act_bytes = 2 * cand * (cp + max(cp, op)) * 2         # in + out tiles, dbl-buffered
        if weight_bytes + act_bytes <= int(VMEM_LIMIT * 0.9):
            return cand
    return batch


# --------------------------------------------------------------------------------
# Kernel 1: fc1 (bf16 MXU) + bn1 batch-statistics accumulate / finalize.
#   outputs: h (staged activations, bf16), scale1/shift1 (fused bn1 affine, f32).
#   During the grid the scale1/shift1 blocks hold running sum / sum-of-squares and
#   are converted in place to scale/shift on the last batch tile.
# --------------------------------------------------------------------------------
def _fc1_stats_kernel(x_ref, w1t_ref, g1_ref, be1_ref,
                      h_ref, scale1_ref, shift1_ref, *, true_b, nb):
    i = pl.program_id(0)

    @pl.when(i == 0)
    def _init():
        scale1_ref[...] = jnp.zeros_like(scale1_ref)
        shift1_ref[...] = jnp.zeros_like(shift1_ref)

    # fc1 -- bias dropped: bn1's batch-mean subtraction absorbs it exactly.
    h = jnp.dot(x_ref[...], w1t_ref[...], preferred_element_type=jnp.float32)
    h_ref[...] = h.astype(h_ref.dtype)

    # One-pass batch statistics (per column): sum and sum of squares (f32).
    scale1_ref[...] += jnp.sum(h, axis=0, keepdims=True)
    shift1_ref[...] += jnp.sum(h * h, axis=0, keepdims=True)

    @pl.when(i == nb - 1)
    def _finalize():
        s = scale1_ref[...]
        ss = shift1_ref[...]
        mean = s * (1.0 / true_b)
        var = ss * (1.0 / true_b) - mean * mean        # biased (training-mode) variance
        scale = g1_ref[...] * jax.lax.rsqrt(var + BN_EPS)
        scale1_ref[...] = scale
        shift1_ref[...] = be1_ref[...] - mean * scale


# --------------------------------------------------------------------------------
# Kernel 2: fused bn1 affine + ReLU + fc2 (bf16 MXU) + bn2 statistics.
#   outputs: z (staged, bf16), scale2/shift2 (fused bn2 affine, f32).
# --------------------------------------------------------------------------------
def _bn1_relu_fc2_kernel(h_ref, scale1_ref, shift1_ref, w2t_ref, g2_ref, be2_ref,
                         z_ref, scale2_ref, shift2_ref, *, true_b, nb):
    i = pl.program_id(0)

    @pl.when(i == 0)
    def _init():
        scale2_ref[...] = jnp.zeros_like(scale2_ref)
        shift2_ref[...] = jnp.zeros_like(shift2_ref)

    h = h_ref[...].astype(jnp.float32)
    a = jnp.maximum(h * scale1_ref[...] + shift1_ref[...], 0.0)   # fused bn1 + ReLU
    z = jnp.dot(a.astype(jnp.bfloat16), w2t_ref[...],
                preferred_element_type=jnp.float32)               # fc2 (no bias)
    z_ref[...] = z.astype(z_ref.dtype)

    scale2_ref[...] += jnp.sum(z, axis=0, keepdims=True)
    shift2_ref[...] += jnp.sum(z * z, axis=0, keepdims=True)

    @pl.when(i == nb - 1)
    def _finalize():
        s = scale2_ref[...]
        ss = shift2_ref[...]
        mean = s * (1.0 / true_b)
        var = ss * (1.0 / true_b) - mean * mean
        scale = g2_ref[...] * jax.lax.rsqrt(var + BN_EPS)
        scale2_ref[...] = scale
        shift2_ref[...] = be2_ref[...] - mean * scale


# --------------------------------------------------------------------------------
# Kernel 3: apply the fused bn2 affine (elementwise, lane-dense output).
# --------------------------------------------------------------------------------
def _bn2_apply_kernel(z_ref, scale2_ref, shift2_ref, o_ref):
    z = z_ref[...].astype(jnp.float32)
    o_ref[...] = (z * scale2_ref[...] + shift2_ref[...]).astype(o_ref.dtype)


# --------------------------------------------------------------------------------
# Parameter handling.
# --------------------------------------------------------------------------------
def init_params(key, ch, output_cnt=None):
    if output_cnt is None:
        output_cnt = ch
    k1, k2, k3 = jax.random.split(key, 3)
    bound = 1.0 / jnp.sqrt(ch)
    return {
        "w1": jax.random.uniform(k1, (ch, ch), jnp.float32, -bound, bound),
        "b1": jax.random.uniform(k2, (ch,), jnp.float32, -bound, bound),
        "gamma1": jnp.ones((ch,), jnp.float32),
        "beta1": jnp.zeros((ch,), jnp.float32),
        "w2": jax.random.uniform(k3, (output_cnt, ch), jnp.float32, -bound, bound),
        "gamma2": jnp.ones((output_cnt,), jnp.float32),
        "beta2": jnp.zeros((output_cnt,), jnp.float32),
    }


def prepare_params(params):
    """One-time prep, hoisted out of the per-call path: pre-transpose + pre-cast
    weights to bf16, pad feature dims to lane (128) multiples, reshape BN affine
    params to (1, C). fc1's bias is intentionally omitted (absorbed by bn1's mean).
    Zero-padded feature columns stay exactly 0 through BN (0 - mean(0) = 0)."""
    ch = params["w1"].shape[1]
    out_cnt = params["w2"].shape[0]
    cp = _round_up(ch, LANE)
    op = _round_up(out_cnt, LANE)

    w1t = jnp.zeros((cp, cp), jnp.float32).at[:ch, :ch].set(params["w1"].T)
    w2t = jnp.zeros((cp, op), jnp.float32).at[:ch, :out_cnt].set(params["w2"].T)

    def pad_row(v, n, fill):
        row = jnp.full((1, n), fill, jnp.float32)
        return row.at[0, :v.shape[0]].set(v.astype(jnp.float32))

    prepared = {
        "w1t": w1t.astype(jnp.bfloat16),                 # (cp, cp)
        "w2t": w2t.astype(jnp.bfloat16),                 # (cp, op)
        "gamma1": pad_row(params["gamma1"], cp, 1.0),
        "beta1": pad_row(params["beta1"], cp, 0.0),
        "gamma2": pad_row(params["gamma2"], op, 1.0),
        "beta2": pad_row(params["beta2"], op, 0.0),
    }
    meta = {"ch": ch, "out_cnt": out_cnt, "cp": cp, "op": op}
    return prepared, meta


# --------------------------------------------------------------------------------
# Forward pass.
# --------------------------------------------------------------------------------
@functools.partial(jax.jit, static_argnames=("out_cnt", "block_b"))
def proj_head_forward(x, prepared, *, out_cnt, block_b=None):
    batch, ch = x.shape
    cp = prepared["w1t"].shape[0]
    op = prepared["w2t"].shape[1]

    if cp != ch:                                   # lane-pad input features with zeros
        x = jnp.pad(x, ((0, 0), (0, cp - ch)))
    x = x.astype(jnp.bfloat16)                     # bf16 MXU operand

    tb = _pick_block_b(batch, cp, op, block_b)
    nb = batch // tb

    params_acc = pltpu.CompilerParams(
        dimension_semantics=("arbitrary",),        # BN stats carried across batch tiles
        vmem_limit_bytes=VMEM_LIMIT)
    params_par = pltpu.CompilerParams(
        dimension_semantics=("parallel",),
        vmem_limit_bytes=VMEM_LIMIT)

    col_c = pl.BlockSpec((1, cp), lambda i: (0, 0))
    col_o = pl.BlockSpec((1, op), lambda i: (0, 0))

    # ---- kernel 1: fc1 + bn1 statistics ----
    h, scale1, shift1 = pl.pallas_call(
        functools.partial(_fc1_stats_kernel, true_b=batch, nb=nb),
        grid=(nb,),
        in_specs=[
            pl.BlockSpec((tb, cp), lambda i: (i, 0)),     # x batch tile
            pl.BlockSpec((cp, cp), lambda i: (0, 0)),     # w1t, VMEM-resident
            col_c, col_c,                                  # gamma1, beta1
        ],
        out_specs=[
            pl.BlockSpec((tb, cp), lambda i: (i, 0)),     # h batch tile (staged)
            col_c, col_c,                                  # scale1, shift1 accumulators
        ],
        out_shape=(
            jax.ShapeDtypeStruct((batch, cp), jnp.bfloat16),
            jax.ShapeDtypeStruct((1, cp), jnp.float32),
            jax.ShapeDtypeStruct((1, cp), jnp.float32),
        ),
        compiler_params=params_acc,
        cost_estimate=pl.CostEstimate(
            flops=2 * batch * cp * cp,
            transcendentals=cp,
            bytes_accessed=2 * (batch * cp + cp * cp + batch * cp)),
    )(x, prepared["w1t"], prepared["gamma1"], prepared["beta1"])

    # ---- kernel 2: bn1 affine + ReLU + fc2 + bn2 statistics ----
    z, scale2, shift2 = pl.pallas_call(
        functools.partial(_bn1_relu_fc2_kernel, true_b=batch, nb=nb),
        grid=(nb,),
        in_specs=[
            pl.BlockSpec((tb, cp), lambda i: (i, 0)),     # h batch tile
            col_c, col_c,                                  # scale1, shift1
            pl.BlockSpec((cp, op), lambda i: (0, 0)),     # w2t, VMEM-resident
            col_o, col_o,                                  # gamma2, beta2
        ],
        out_specs=[
            pl.BlockSpec((tb, op), lambda i: (i, 0)),     # z batch tile (staged)
            col_o, col_o,                                  # scale2, shift2 accumulators
        ],
        out_shape=(
            jax.ShapeDtypeStruct((batch, op), jnp.bfloat16),
            jax.ShapeDtypeStruct((1, op), jnp.float32),
            jax.ShapeDtypeStruct((1, op), jnp.float32),
        ),
        compiler_params=params_acc,
        cost_estimate=pl.CostEstimate(
            flops=2 * batch * cp * op,
            transcendentals=op,
            bytes_accessed=2 * (batch * cp + cp * op + batch * op)),
    )(h, scale1, shift1, prepared["w2t"], prepared["gamma2"], prepared["beta2"])

    # ---- kernel 3: bn2 affine apply (lane-dense f32 output) ----
    out = pl.pallas_call(
        _bn2_apply_kernel,
        grid=(nb,),
        in_specs=[
            pl.BlockSpec((tb, op), lambda i: (i, 0)),
            col_o, col_o,
        ],
        out_specs=pl.BlockSpec((tb, op), lambda i: (i, 0)),
        out_shape=jax.ShapeDtypeStruct((batch, op), jnp.float32),
        compiler_params=params_par,
        cost_estimate=pl.CostEstimate(
            flops=2 * batch * op,
            transcendentals=0,
            bytes_accessed=2 * batch * op + 4 * batch * op),
    )(z, scale2, shift2)

    if op != out_cnt:
        out = out[:, :out_cnt]
    return out


# --------------------------------------------------------------------------------
# Pure-JAX f32 reference of the PyTorch forward (training-mode BN, with fc1 bias).
# --------------------------------------------------------------------------------
def _reference(x, p):
    h = x @ p["w1"].T + p["b1"]
    m, v = jnp.mean(h, 0), jnp.var(h, 0)
    h = (h - m) / jnp.sqrt(v + BN_EPS) * p["gamma1"] + p["beta1"]
    h = jnp.maximum(h, 0.0)
    z = h @ p["w2"].T
    m, v = jnp.mean(z, 0), jnp.var(z, 0)
    z = (z - m) / jnp.sqrt(v + BN_EPS) * p["gamma2"] + p["beta2"]
    return z


if __name__ == "__main__":
    key = jax.random.PRNGKey(0)
    kx, kp = jax.random.split(key)

    # Small but lane-aligned shapes; block_b=16 -> 4 batch tiles, exercising the
    # cross-tile BN-statistics accumulation path.
    batch, ch, out_cnt = 64, 128, 256
    x = jax.random.normal(kx, (batch, ch), jnp.float32)
    params = init_params(kp, ch, out_cnt)
    prepared, meta = prepare_params(params)

    out = proj_head_forward(x, prepared, out_cnt=meta["out_cnt"], block_b=16)
    out = jax.block_until_ready(out)

    ref = _reference(x, params)
    assert out.shape == (batch, out_cnt), out.shape
    max_err = float(jnp.max(jnp.abs(out - ref)))
    # bf16 MXU operands + bf16-staged activations vs. an exact-f32 reference whose
    # output has unit batch-variance; observed error is O(1e-2), tolerance leaves
    # margin while still catching any structural/statistics bug (those give O(1)).
    assert jnp.allclose(out, ref, atol=1e-1, rtol=1e-1), max_err
    print("KERNEL_OK")
</pallas_src>

<mosaic_0001>
module attributes {stable_mosaic.version = 11 : i64} {
  func.func @_bn2_apply_kernel(%arg0: i32, %arg1: memref<16x256xbf16, #tpu.memory_space<vmem>>, %arg2: memref<1x256xf32, #tpu.memory_space<vmem>>, %arg3: memref<1x256xf32, #tpu.memory_space<vmem>>, %arg4: memref<16x256xf32, #tpu.memory_space<vmem>>) attributes {dimension_semantics = [#tpu.dimension_semantics<parallel>], iteration_bounds = array<i64: 4>, scalar_prefetch = 0 : i64, scratch_operands = 0 : i64, tpu.core_type = #tpu.core_type<tc>, window_params = [{transform_indices = @transform_0, window_bounds = array<i64: 16, 256>}, {pipeline_mode = #tpu.pipeline_mode<synchronous>, transform_indices = @transform_1, window_bounds = array<i64: 1, 256>}, {pipeline_mode = #tpu.pipeline_mode<synchronous>, transform_indices = @transform_2, window_bounds = array<i64: 1, 256>}, {transform_indices = @transform_3, window_bounds = array<i64: 16, 256>}]} {
    %c0 = arith.constant 0 : index
    %c0_0 = arith.constant 0 : index
    %0 = vector.load %arg1[%c0, %c0_0] : memref<16x256xbf16, #tpu.memory_space<vmem>>, vector<16x256xbf16>
    %1 = arith.extf %0 : vector<16x256xbf16> to vector<16x256xf32>
    %c0_1 = arith.constant 0 : index
    %c0_2 = arith.constant 0 : index
    %2 = vector.load %arg2[%c0_1, %c0_2] : memref<1x256xf32, #tpu.memory_space<vmem>>, vector<1x256xf32>
    %3 = vector.broadcast %2 : vector<1x256xf32> to vector<16x256xf32>
    %4 = arith.mulf %1, %3 : vector<16x256xf32>
    %c0_3 = arith.constant 0 : index
    %c0_4 = arith.constant 0 : index
    %5 = vector.load %arg3[%c0_3, %c0_4] : memref<1x256xf32, #tpu.memory_space<vmem>>, vector<1x256xf32>
    %6 = vector.broadcast %5 : vector<1x256xf32> to vector<16x256xf32>
    %7 = arith.addf %4, %6 : vector<16x256xf32>
    %c0_5 = arith.constant 0 : index
    %c0_6 = arith.constant 0 : index
    %8 = vector.load %arg4[%c0_5, %c0_6] : memref<16x256xf32, #tpu.memory_space<vmem>>, vector<16x256xf32>
    tpu.vector_store %arg4[%c0_5, %c0_6], %7 {strides = array<i32>} : memref<16x256xf32, #tpu.memory_space<vmem>>, vector<16x256xf32>,
    return
  }
  func.func @transform_0(%arg0: i32) -> (i32, i32) {
    %c0_i32 = arith.constant 0 : i32
    %c0_i32_0 = arith.constant 0 : i32
    return %arg0, %c0_i32 : i32, i32
  }
  func.func @transform_1(%arg0: i32) -> (i32, i32) {
    %c0_i32 = arith.constant 0 : i32
    %c0_i32_0 = arith.constant 0 : i32
    %c0_i32_1 = arith.constant 0 : i32
    return %c0_i32, %c0_i32_0 : i32, i32
  }
  func.func @transform_2(%arg0: i32) -> (i32, i32) {
    %c0_i32 = arith.constant 0 : i32
    %c0_i32_0 = arith.constant 0 : i32
    %c0_i32_1 = arith.constant 0 : i32
    return %c0_i32, %c0_i32_0 : i32, i32
  }
  func.func @transform_3(%arg0: i32) -> (i32, i32) {
    %c0_i32 = arith.constant 0 : i32
    %c0_i32_0 = arith.constant 0 : i32
    return %arg0, %c0_i32 : i32, i32
  }
}

module attributes {stable_mosaic.version = 11 : i64} {
  func.func @_bn1_relu_fc2_kernel(%arg0: i32, %arg1: memref<16x128xbf16, #tpu.memory_space<vmem>>, %arg2: memref<1x128xf32, #tpu.memory_space<vmem>>, %arg3: memref<1x128xf32, #tpu.memory_space<vmem>>, %arg4: memref<128x256xbf16, #tpu.memory_space<vmem>>, %arg5: memref<1x256xf32, #tpu.memory_space<vmem>>, %arg6: memref<1x256xf32, #tpu.memory_space<vmem>>, %arg7: memref<16x256xbf16, #tpu.memory_space<vmem>>, %arg8: memref<1x256xf32, #tpu.memory_space<vmem>>, %arg9: memref<1x256xf32, #tpu.memory_space<vmem>>) attributes {dimension_semantics = [#tpu.dimension_semantics<arbitrary>], iteration_bounds = array<i64: 4>, scalar_prefetch = 0 : i64, scratch_operands = 0 : i64, tpu.core_type = #tpu.core_type<tc>, window_params = [{transform_indices = @transform_0, window_bounds = array<i64: 16, 128>}, {pipeline_mode = #tpu.pipeline_mode<synchronous>, transform_indices = @transform_1, window_bounds = array<i64: 1, 128>}, {pipeline_mode = #tpu.pipeline_mode<synchronous>, transform_indices = @transform_2, window_bounds = array<i64: 1, 128>}, {pipeline_mode = #tpu.pipeline_mode<synchronous>, transform_indices = @transform_3, window_bounds = array<i64: 128, 256>}, {pipeline_mode = #tpu.pipeline_mode<synchronous>, transform_indices = @transform_4, window_bounds = array<i64: 1, 256>}, {pipeline_mode = #tpu.pipeline_mode<synchronous>, transform_indices = @transform_5, window_bounds = array<i64: 1, 256>}, {transform_indices = @transform_6, window_bounds = array<i64: 16, 256>}, {pipeline_mode = #tpu.pipeline_mode<synchronous>, transform_indices = @transform_7, window_bounds = array<i64: 1, 256>}, {pipeline_mode = #tpu.pipeline_mode<synchronous>, transform_indices = @transform_8, window_bounds = array<i64: 1, 256>}]} {
    %c0_i32 = arith.constant 0 : i32
    %0 = arith.cmpi eq, %arg0, %c0_i32 : i32
    %1 = arith.extui %0 : i1 to i32
    %c0_i32_0 = arith.constant 0 : i32
    %2 = arith.cmpi ne, %1, %c0_i32_0 : i32
    scf.if %2 {
      %cst_22 = arith.constant 0.000000e+00 : f32
      %32 = vector.broadcast %cst_22 : f32 to vector<1x256xf32>
      %c0_23 = arith.constant 0 : index
      %c0_24 = arith.constant 0 : index
      %33 = vector.load %arg8[%c0_23, %c0_24] : memref<1x256xf32, #tpu.memory_space<vmem>>, vector<1x256xf32>
      tpu.vector_store %arg8[%c0_23, %c0_24], %32 {strides = array<i32>} : memref<1x256xf32, #tpu.memory_space<vmem>>, vector<1x256xf32>,
      %cst_25 = arith.constant 0.000000e+00 : f32
      %34 = vector.broadcast %cst_25 : f32 to vector<1x256xf32>
      %c0_26 = arith.constant 0 : index
      %c0_27 = arith.constant 0 : index
      %35 = vector.load %arg9[%c0_26, %c0_27] : memref<1x256xf32, #tpu.memory_space<vmem>>, vector<1x256xf32>
      tpu.vector_store %arg9[%c0_26, %c0_27], %34 {strides = array<i32>} : memref<1x256xf32, #tpu.memory_space<vmem>>, vector<1x256xf32>,
    } else {
    }
    %c0 = arith.constant 0 : index
    %c0_1 = arith.constant 0 : index
    %3 = vector.load %arg1[%c0, %c0_1] : memref<16x128xbf16, #tpu.memory_space<vmem>>, vector<16x128xbf16>
    %4 = arith.extf %3 : vector<16x128xbf16> to vector<16x128xf32>
    %c0_2 = arith.constant 0 : index
    %c0_3 = arith.constant 0 : index
    %5 = vector.load %arg2[%c0_2, %c0_3] : memref<1x128xf32, #tpu.memory_space<vmem>>, vector<1x128xf32>
    %6 = vector.broadcast %5 : vector<1x128xf32> to vector<16x128xf32>
    %7 = arith.mulf %4, %6 : vector<16x128xf32>
    %c0_4 = arith.constant 0 : index
    %c0_5 = arith.constant 0 : index
    %8 = vector.load %arg3[%c0_4, %c0_5] : memref<1x128xf32, #tpu.memory_space<vmem>>, vector<1x128xf32>
    %9 = vector.broadcast %8 : vector<1x128xf32> to vector<16x128xf32>
    %10 = arith.addf %7, %9 : vector<16x128xf32>
    %cst = arith.constant 0.000000e+00 : f32
    %11 = vector.broadcast %cst : f32 to vector<16x128xf32>
    %12 = arith.maximumf %10, %11 : vector<16x128xf32>
    %13 = arith.truncf %12 : vector<16x128xf32> to vector<16x128xbf16>
    %c0_6 = arith.constant 0 : index
    %c0_7 = arith.constant 0 : index
    %14 = vector.load %arg4[%c0_6, %c0_7] : memref<128x256xbf16, #tpu.memory_space<vmem>>, vector<128x256xbf16>
    %cst_8 = arith.constant dense<0.000000e+00> : vector<16x256xf32>
    %15 = tpu.matmul %13, %14, %cst_8 {dimension_numbers = #tpu.dot_dimension_numbers<[1], [0], [0], [1], [0, 0, 1, 1], [], []>} : vector<16x128xbf16>, vector<128x256xbf16>, vector<16x256xf32> -> vector<16x256xf32>
    %16 = arith.truncf %15 : vector<16x256xf32> to vector<16x256xbf16>
    %c0_9 = arith.constant 0 : index
    %c0_10 = arith.constant 0 : index
    %17 = vector.load %arg7[%c0_9, %c0_10] : memref<16x256xbf16, #tpu.memory_space<vmem>>, vector<16x256xbf16>
    tpu.vector_store %arg7[%c0_9, %c0_10], %16 {strides = array<i32>} : memref<16x256xbf16, #tpu.memory_space<vmem>>, vector<16x256xbf16>,
    %c0_11 = arith.constant 0 : index
    %c0_12 = arith.constant 0 : index
    %18 = vector.load %arg8[%c0_11, %c0_12] : memref<1x256xf32, #tpu.memory_space<vmem>>, vector<1x256xf32>
    %cst_13 = arith.constant dense<0.000000e+00> : vector<256xf32>
    %19 = vector.multi_reduction <add>, %15, %cst_13 [0] : vector<16x256xf32> to vector<256xf32>
    %20 = vector.shape_cast %19 : vector<256xf32> to vector<1x256xf32>
    %21 = arith.addf %18, %20 : vector<1x256xf32>
    %c0_14 = arith.constant 0 : index
    %c0_15 = arith.constant 0 : index
    %22 = vector.load %arg8[%c0_14, %c0_15] : memref<1x256xf32, #tpu.memory_space<vmem>>, vector<1x256xf32>
    tpu.vector_store %arg8[%c0_14, %c0_15], %21 {strides = array<i32>} : memref<1x256xf32, #tpu.memory_space<vmem>>, vector<1x256xf32>,
    %c0_16 = arith.constant 0 : index
    %c0_17 = arith.constant 0 : index
    %23 = vector.load %arg9[%c0_16, %c0_17] : memref<1x256xf32, #tpu.memory_space<vmem>>, vector<1x256xf32>
    %24 = arith.mulf %15, %15 : vector<16x256xf32>
    %cst_18 = arith.constant dense<0.000000e+00> : vector<256xf32>
    %25 = vector.multi_reduction <add>, %24, %cst_18 [0] : vector<16x256xf32> to vector<256xf32>
    %26 = vector.shape_cast %25 : vector<256xf32> to vector<1x256xf32>
    %27 = arith.addf %23, %26 : vector<1x256xf32>
    %c0_19 = arith.constant 0 : index
    %c0_20 = arith.constant 0 : index
    %28 = vector.load %arg9[%c0_19, %c0_20] : memref<1x256xf32, #tpu.memory_space<vmem>>, vector<1x256xf32>
    tpu.vector_store %arg9[%c0_19, %c0_20], %27 {strides = array<i32>} : memref<1x256xf32, #tpu.memory_space<vmem>>, vector<1x256xf32>,
    %c3_i32 = arith.constant 3 : i32
    %29 = arith.cmpi eq, %arg0, %c3_i32 : i32
    %30 = arith.extui %29 : i1 to i32
    %c0_i32_21 = arith.constant 0 : i32
    %31 = arith.cmpi ne, %30, %c0_i32_21 : i32
    scf.if %31 {
      %c0_22 = arith.constant 0 : index
      %c0_23 = arith.constant 0 : index
      %32 = vector.load %arg8[%c0_22, %c0_23] : memref<1x256xf32, #tpu.memory_space<vmem>>, vector<1x256xf32>
      %c0_24 = arith.constant 0 : index
      %c0_25 = arith.constant 0 : index
      %33 = vector.load %arg9[%c0_24, %c0_25] : memref<1x256xf32, #tpu.memory_space<vmem>>, vector<1x256xf32>
      %cst_26 = arith.constant 1.562500e-02 : f32
      %34 = vector.broadcast %cst_26 : f32 to vector<1x256xf32>
      %35 = arith.mulf %32, %34 : vector<1x256xf32>
      %cst_27 = arith.constant 1.562500e-02 : f32
      %36 = vector.broadcast %cst_27 : f32 to vector<1x256xf32>
      %37 = arith.mulf %33, %36 : vector<1x256xf32>
      %38 = arith.mulf %35, %35 : vector<1x256xf32>
      %39 = arith.subf %37, %38 : vector<1x256xf32>
      %c0_28 = arith.constant 0 : index
      %c0_29 = arith.constant 0 : index
      %40 = vector.load %arg5[%c0_28, %c0_29] : memref<1x256xf32, #tpu.memory_space<vmem>>, vector<1x256xf32>
      %cst_30 = arith.constant 9.99999974E-6 : f32
      %41 = vector.broadcast %cst_30 : f32 to vector<1x256xf32>
      %42 = arith.addf %39, %41 : vector<1x256xf32>
      %43 = math.rsqrt %42 : vector<1x256xf32>
      %44 = arith.mulf %40, %43 : vector<1x256xf32>
      %c0_31 = arith.constant 0 : index
      %c0_32 = arith.constant 0 : index
      %45 = vector.load %arg8[%c0_31, %c0_32] : memref<1x256xf32, #tpu.memory_space<vmem>>, vector<1x256xf32>
      tpu.vector_store %arg8[%c0_31, %c0_32], %44 {strides = array<i32>} : memref<1x256xf32, #tpu.memory_space<vmem>>, vector<1x256xf32>,
      %c0_33 = arith.constant 0 : index
      %c0_34 = arith.constant 0 : index
      %46 = vector.load %arg6[%c0_33, %c0_34] : memref<1x256xf32, #tpu.memory_space<vmem>>, vector<1x256xf32>
      %47 = arith.mulf %35, %44 : vector<1x256xf32>
      %48 = arith.subf %46, %47 : vector<1x256xf32>
      %c0_35 = arith.constant 0 : index
      %c0_36 = arith.constant 0 : index
      %49 = vector.load %arg9[%c0_35, %c0_36] : memref<1x256xf32, #tpu.memory_space<vmem>>, vector<1x256xf32>
      tpu.vector_store %arg9[%c0_35, %c0_36], %48 {strides = array<i32>} : memref<1x256xf32, #tpu.memory_space<vmem>>, vector<1x256xf32>,
    } else {
    }
    return
  }
  func.func @transform_0(%arg0: i32) -> (i32, i32) {
    %c0_i32 = arith.constant 0 : i32
    %c0_i32_0 = arith.constant 0 : i32
    return %arg0, %c0_i32 : i32, i32
  }
  func.func @transform_1(%arg0: i32) -> (i32, i32) {
    %c0_i32 = arith.constant 0 : i32
    %c0_i32_0 = arith.constant 0 : i32
    %c0_i32_1 = arith.constant 0 : i32
    return %c0_i32, %c0_i32_0 : i32, i32
  }
  func.func @transform_2(%arg0: i32) -> (i32, i32) {
    %c0_i32 = arith.constant 0 : i32
    %c0_i32_0 = arith.constant 0 : i32
    %c0_i32_1 = arith.constant 0 : i32
    return %c0_i32, %c0_i32_0 : i32, i32
  }
  func.func @transform_3(%arg0: i32) -> (i32, i32) {
    %c0_i32 = arith.constant 0 : i32
    %c0_i32_0 = arith.constant 0 : i32
    %c0_i32_1 = arith.constant 0 : i32
    return %c0_i32, %c0_i32_0 : i32, i32
  }
  func.func @transform_4(%arg0: i32) -> (i32, i32) {
    %c0_i32 = arith.constant 0 : i32
    %c0_i32_0 = arith.constant 0 : i32
    %c0_i32_1 = arith.constant 0 : i32
    return %c0_i32, %c0_i32_0 : i32, i32
  }
  func.func @transform_5(%arg0: i32) -> (i32, i32) {
    %c0_i32 = arith.constant 0 : i32
    %c0_i32_0 = arith.constant 0 : i32
    %c0_i32_1 = arith.constant 0 : i32
    return %c0_i32, %c0_i32_0 : i32, i32
  }
  func.func @transform_6(%arg0: i32) -> (i32, i32) {
    %c0_i32 = arith.constant 0 : i32
    %c0_i32_0 = arith.constant 0 : i32
    return %arg0, %c0_i32 : i32, i32
  }
  func.func @transform_7(%arg0: i32) -> (i32, i32) {
    %c0_i32 = arith.constant 0 : i32
    %c0_i32_0 = arith.constant 0 : i32
    %c0_i32_1 = arith.constant 0 : i32
    return %c0_i32, %c0_i32_0 : i32, i32
  }
  func.func @transform_8(%arg0: i32) -> (i32, i32) {
    %c0_i32 = arith.constant 0 : i32
    %c0_i32_0 = arith.constant 0 : i32
    %c0_i32_1 = arith.constant 0 : i32
    return %c0_i32, %c0_i32_0 : i32, i32
  }
}

module attributes {stable_mosaic.version = 11 : i64} {
  func.func @_fc1_stats_kernel(%arg0: i32, %arg1: memref<16x128xbf16, #tpu.memory_space<vmem>>, %arg2: memref<128x128xbf16, #tpu.memory_space<vmem>>, %arg3: memref<1x128xf32, #tpu.memory_space<vmem>>, %arg4: memref<1x128xf32, #tpu.memory_space<vmem>>, %arg5: memref<16x128xbf16, #tpu.memory_space<vmem>>, %arg6: memref<1x128xf32, #tpu.memory_space<vmem>>, %arg7: memref<1x128xf32, #tpu.memory_space<vmem>>) attributes {dimension_semantics = [#tpu.dimension_semantics<arbitrary>], iteration_bounds = array<i64: 4>, scalar_prefetch = 0 : i64, scratch_operands = 0 : i64, tpu.core_type = #tpu.core_type<tc>, window_params = [{transform_indices = @transform_0, window_bounds = array<i64: 16, 128>}, {pipeline_mode = #tpu.pipeline_mode<synchronous>, transform_indices = @transform_1, window_bounds = array<i64: 128, 128>}, {pipeline_mode = #tpu.pipeline_mode<synchronous>, transform_indices = @transform_2, window_bounds = array<i64: 1, 128>}, {pipeline_mode = #tpu.pipeline_mode<synchronous>, transform_indices = @transform_3, window_bounds = array<i64: 1, 128>}, {transform_indices = @transform_4, window_bounds = array<i64: 16, 128>}, {pipeline_mode = #tpu.pipeline_mode<synchronous>, transform_indices = @transform_5, window_bounds = array<i64: 1, 128>}, {pipeline_mode = #tpu.pipeline_mode<synchronous>, transform_indices = @transform_6, window_bounds = array<i64: 1, 128>}]} {
    %c0_i32 = arith.constant 0 : i32
    %0 = arith.cmpi eq, %arg0, %c0_i32 : i32
    %1 = arith.extui %0 : i1 to i32
    %c0_i32_0 = arith.constant 0 : i32
    %2 = arith.cmpi ne, %1, %c0_i32_0 : i32
    scf.if %2 {
      %cst_17 = arith.constant 0.000000e+00 : f32
      %22 = vector.broadcast %cst_17 : f32 to vector<1x128xf32>
      %c0_18 = arith.constant 0 : index
      %c0_19 = arith.constant 0 : index
      %23 = vector.load %arg6[%c0_18, %c0_19] : memref<1x128xf32, #tpu.memory_space<vmem>>, vector<1x128xf32>
      tpu.vector_store %arg6[%c0_18, %c0_19], %22 {strides = array<i32>} : memref<1x128xf32, #tpu.memory_space<vmem>>, vector<1x128xf32>,
      %cst_20 = arith.constant 0.000000e+00 : f32
      %24 = vector.broadcast %cst_20 : f32 to vector<1x128xf32>
      %c0_21 = arith.constant 0 : index
      %c0_22 = arith.constant 0 : index
      %25 = vector.load %arg7[%c0_21, %c0_22] : memref<1x128xf32, #tpu.memory_space<vmem>>, vector<1x128xf32>
      tpu.vector_store %arg7[%c0_21, %c0_22], %24 {strides = array<i32>} : memref<1x128xf32, #tpu.memory_space<vmem>>, vector<1x128xf32>,
    } else {
    }
    %c0 = arith.constant 0 : index
    %c0_1 = arith.constant 0 : index
    %3 = vector.load %arg1[%c0, %c0_1] : memref<16x128xbf16, #tpu.memory_space<vmem>>, vector<16x128xbf16>
    %c0_2 = arith.constant 0 : index
    %c0_3 = arith.constant 0 : index
    %4 = vector.load %arg2[%c0_2, %c0_3] : memref<128x128xbf16, #tpu.memory_space<vmem>>, vector<128x128xbf16>
    %cst = arith.constant dense<0.000000e+00> : vector<16x128xf32>
    %5 = tpu.matmul %3, %4, %cst {dimension_numbers = #tpu.dot_dimension_numbers<[1], [0], [0], [1], [0, 0, 1, 1], [], []>} : vector<16x128xbf16>, vector<128x128xbf16>, vector<16x128xf32> -> vector<16x128xf32>
    %6 = arith.truncf %5 : vector<16x128xf32> to vector<16x128xbf16>
    %c0_4 = arith.constant 0 : index
    %c0_5 = arith.constant 0 : index
    %7 = vector.load %arg5[%c0_4, %c0_5] : memref<16x128xbf16, #tpu.memory_space<vmem>>, vector<16x128xbf16>
    tpu.vector_store %arg5[%c0_4, %c0_5], %6 {strides = array<i32>} : memref<16x128xbf16, #tpu.memory_space<vmem>>, vector<16x128xbf16>,
    %c0_6 = arith.constant 0 : index
    %c0_7 = arith.constant 0 : index
    %8 = vector.load %arg6[%c0_6, %c0_7] : memref<1x128xf32, #tpu.memory_space<vmem>>, vector<1x128xf32>
    %cst_8 = arith.constant dense<0.000000e+00> : vector<128xf32>
    %9 = vector.multi_reduction <add>, %5, %cst_8 [0] : vector<16x128xf32> to vector<128xf32>
    %10 = vector.shape_cast %9 : vector<128xf32> to vector<1x128xf32>
    %11 = arith.addf %8, %10 : vector<1x128xf32>
    %c0_9 = arith.constant 0 : index
    %c0_10 = arith.constant 0 : index
    %12 = vector.load %arg6[%c0_9, %c0_10] : memref<1x128xf32, #tpu.memory_space<vmem>>, vector<1x128xf32>
    tpu.vector_store %arg6[%c0_9, %c0_10], %11 {strides = array<i32>} : memref<1x128xf32, #tpu.memory_space<vmem>>, vector<1x128xf32>,
    %c0_11 = arith.constant 0 : index
    %c0_12 = arith.constant 0 : index
    %13 = vector.load %arg7[%c0_11, %c0_12] : memref<1x128xf32, #tpu.memory_space<vmem>>, vector<1x128xf32>
    %14 = arith.mulf %5, %5 : vector<16x128xf32>
    %cst_13 = arith.constant dense<0.000000e+00> : vector<128xf32>
    %15 = vector.multi_reduction <add>, %14, %cst_13 [0] : vector<16x128xf32> to vector<128xf32>
    %16 = vector.shape_cast %15 : vector<128xf32> to vector<1x128xf32>
    %17 = arith.addf %13, %16 : vector<1x128xf32>
    %c0_14 = arith.constant 0 : index
    %c0_15 = arith.constant 0 : index
    %18 = vector.load %arg7[%c0_14, %c0_15] : memref<1x128xf32, #tpu.memory_space<vmem>>, vector<1x128xf32>
    tpu.vector_store %arg7[%c0_14, %c0_15], %17 {strides = array<i32>} : memref<1x128xf32, #tpu.memory_space<vmem>>, vector<1x128xf32>,
    %c3_i32 = arith.constant 3 : i32
    %19 = arith.cmpi eq, %arg0, %c3_i32 : i32
    %20 = arith.extui %19 : i1 to i32
    %c0_i32_16 = arith.constant 0 : i32
    %21 = arith.cmpi ne, %20, %c0_i32_16 : i32
    scf.if %21 {
      %c0_17 = arith.constant 0 : index
      %c0_18 = arith.constant 0 : index
      %22 = vector.load %arg6[%c0_17, %c0_18] : memref<1x128xf32, #tpu.memory_space<vmem>>, vector<1x128xf32>
      %c0_19 = arith.constant 0 : index
      %c0_20 = arith.constant 0 : index
      %23 = vector.load %arg7[%c0_19, %c0_20] : memref<1x128xf32, #tpu.memory_space<vmem>>, vector<1x128xf32>
      %cst_21 = arith.constant 1.562500e-02 : f32
      %24 = vector.broadcast %cst_21 : f32 to vector<1x128xf32>
      %25 = arith.mulf %22, %24 : vector<1x128xf32>
      %cst_22 = arith.constant 1.562500e-02 : f32
      %26 = vector.broadcast %cst_22 : f32 to vector<1x128xf32>
      %27 = arith.mulf %23, %26 : vector<1x128xf32>
      %28 = arith.mulf %25, %25 : vector<1x128xf32>
      %29 = arith.subf %27, %28 : vector<1x128xf32>
      %c0_23 = arith.constant 0 : index
      %c0_24 = arith.constant 0 : index
      %30 = vector.load %arg3[%c0_23, %c0_24] : memref<1x128xf32, #tpu.memory_space<vmem>>, vector<1x128xf32>
      %cst_25 = arith.constant 9.99999974E-6 : f32
      %31 = vector.broadcast %cst_25 : f32 to vector<1x128xf32>
      %32 = arith.addf %29, %31 : vector<1x128xf32>
      %33 = math.rsqrt %32 : vector<1x128xf32>
      %34 = arith.mulf %30, %33 : vector<1x128xf32>
      %c0_26 = arith.constant 0 : index
      %c0_27 = arith.constant 0 : index
      %35 = vector.load %arg6[%c0_26, %c0_27] : memref<1x128xf32, #tpu.memory_space<vmem>>, vector<1x128xf32>
      tpu.vector_store %arg6[%c0_26, %c0_27], %34 {strides = array<i32>} : memref<1x128xf32, #tpu.memory_space<vmem>>, vector<1x128xf32>,
      %c0_28 = arith.constant 0 : index
      %c0_29 = arith.constant 0 : index
      %36 = vector.load %arg4[%c0_28, %c0_29] : memref<1x128xf32, #tpu.memory_space<vmem>>, vector<1x128xf32>
      %37 = arith.mulf %25, %34 : vector<1x128xf32>
      %38 = arith.subf %36, %37 : vector<1x128xf32>
      %c0_30 = arith.constant 0 : index
      %c0_31 = arith.constant 0 : index
      %39 = vector.load %arg7[%c0_30, %c0_31] : memref<1x128xf32, #tpu.memory_space<vmem>>, vector<1x128xf32>
      tpu.vector_store %arg7[%c0_30, %c0_31], %38 {strides = array<i32>} : memref<1x128xf32, #tpu.memory_space<vmem>>, vector<1x128xf32>,
    } else {
    }
    return
  }
  func.func @transform_0(%arg0: i32) -> (i32, i32) {
    %c0_i32 = arith.constant 0 : i32
    %c0_i32_0 = arith.constant 0 : i32
    return %arg0, %c0_i32 : i32, i32
  }
  func.func @transform_1(%arg0: i32) -> (i32, i32) {
    %c0_i32 = arith.constant 0 : i32
    %c0_i32_0 = arith.constant 0 : i32
    %c0_i32_1 = arith.constant 0 : i32
    return %c0_i32, %c0_i32_0 : i32, i32
  }
  func.func @transform_2(%arg0: i32) -> (i32, i32) {
    %c0_i32 = arith.constant 0 : i32
    %c0_i32_0 = arith.constant 0 : i32
    %c0_i32_1 = arith.constant 0 : i32
    return %c0_i32, %c0_i32_0 : i32, i32
  }
  func.func @transform_3(%arg0: i32) -> (i32, i32) {
    %c0_i32 = arith.constant 0 : i32
    %c0_i32_0 = arith.constant 0 : i32
    %c0_i32_1 = arith.constant 0 : i32
    return %c0_i32, %c0_i32_0 : i32, i32
  }
  func.func @transform_4(%arg0: i32) -> (i32, i32) {
    %c0_i32 = arith.constant 0 : i32
    %c0_i32_0 = arith.constant 0 : i32
    return %arg0, %c0_i32 : i32, i32
  }
  func.func @transform_5(%arg0: i32) -> (i32, i32) {
    %c0_i32 = arith.constant 0 : i32
    %c0_i32_0 = arith.constant 0 : i32
    %c0_i32_1 = arith.constant 0 : i32
    return %c0_i32, %c0_i32_0 : i32, i32
  }
  func.func @transform_6(%arg0: i32) -> (i32, i32) {
    %c0_i32 = arith.constant 0 : i32
    %c0_i32_0 = arith.constant 0 : i32
    %c0_i32_1 = arith.constant 0 : i32
    return %c0_i32, %c0_i32_0 : i32, i32
  }
}

</mosaic_0001>

<llo_original>
// kernel: proj_head_forward.5
$region0: #{proj_head_forward.5}
  #allocation0 [shape = 'u32[]', space=smem, size = 0x4, offset = 0x4, fixed_abs, tag = 'smem constant byte address 0x4 - core index']
  #allocation1 [shape = 'u32[72,128]{1,0:T(1,128)}', space=vmem, size = 0x9000, scoped, tag = 'internal scratch']
  %s0 = inlined_call_operand.vmem [shape: bf16[64,256], index: 0, kind: input, shape index: {}]
  %s1 = inlined_call_operand.vmem [shape: f32[1,256], index: 1, kind: input, shape index: {}]
  %s2 = inlined_call_operand.vmem [shape: f32[1,256], index: 2, kind: input, shape index: {}]
  %s3 = inlined_call_operand.hbm [shape: f32[64,256], index: 3, kind: output, shape index: {}]
  %s4 = sld [smem:[#allocation0]]
  $region45: #{proj_head_forward.5} parent=0
    _
  %s6 = ssub.s32 1, %s4
  %s7 = scalar_select 0, %s6, %s4
  $region1: #{proj_head_forward.5} parent=0
    #allocation2 [shape = 'u8[32768]{0}', space=vmem, size = 0x8000, scoped, tag = 'output window, operand 0']
    #allocation3 [shape = 's32[2]{0}', space=sflag, size = 0x8, scoped, tag = 'scoped memory for proj_head_forward.5']
    %8 = vsyncpa [#allocation3], 0
    %s9 = scalar_lea.sflag [#allocation3], 1
    %10 = vsyncpa %s9, 0
    loop: start=0, step=1, limit=6
    $region2: #{proj_head_forward.5} parent=1 // loop_pre_header
      _
    $region3: #{proj_head_forward.5} parent=1 // loop_header
      %s12 = sphi 0, %s16
      %p13 = scmp.ge.s32.totalorder %s12, 6
      %s22 = sphi 0, %s24
      %s25 = sphi 0, %s22
      %s26 = sphi 0, %s25
      %s42 = sphi 0, %s26
      %s46 = sphi 0, %s46
      %s48 = sphi 0, %s46
      %s49 = sphi 0, %s48
      %s63 = sphi 0, %s49
      %s67 = sphi 0, %s67
      %s69 = sphi 0, %s67
      %s70 = sphi 0, %s69
      %s84 = sphi 0, %s70
      %s90 = sphi 0, %s92
      %s93 = sphi 0, %s90
      %s94 = sphi 0, %s93
      %s110 = sphi 0, %s94
    $region4: #{proj_head_forward.5} parent=1 // loop_header_branch
      %15 = sbr.rel (%p13) target = $region8
    $region5: #{proj_head_forward.5} parent=1 // loop_body
      %s17 = ssub.s32 %s12, 1
      %s18 = ssub.s32 %s12, 2
      %s19 = sadd.s32 %s12, 1
      %s20 = ssub.s32 %s12, %s19
      %p21 = scmp.eq.s32.totalorder %s20, 0
      %s23 = sadd.s32 %s22, 1
      %s24 = scalar_select %p21, %s22, %s23
      %p27 = pneg %p21
      %p28 = scmp.eq.s32.totalorder %s12, 3
      %p29 = por %p27, %p28
      %p30 = scmp.ne.s32.totalorder %s22, %s25
      %p31 = scmp.eq.s32.totalorder %s12, 0
      %p32 = por %p30, %p31
      %p33 = scmp.ne.s32.totalorder %s22, %s25
      %p34 = scmp.eq.s32.totalorder %s17, 3
      %p35 = por %p33, %p34
      %p36 = scmp.ne.s32.totalorder %s25, %s26
      %p37 = scmp.eq.s32.totalorder %s17, 0
      %p38 = por %p36, %p37
      %p39 = scmp.ne.s32.totalorder %s25, %s26
      %p40 = scmp.eq.s32.totalorder %s18, 3
      %p41 = por %p39, %p40
      %p43 = scmp.ne.s32.totalorder %s26, %s42
      %p44 = scmp.eq.s32.totalorder %s18, 0
      %p45 = por %p43, %p44
      %s47 = sadd.s32 %s46, 1
      %p50 = scmp.eq.s32.totalorder %s12, 3
      %p51 = scmp.ne.s32.totalorder %s46, %s48
      %p52 = scmp.eq.s32.totalorder %s12, 0
      %p53 = por %p51, %p52
      %p54 = scmp.ne.s32.totalorder %s46, %s48
      %p55 = scmp.eq.s32.totalorder %s17, 3
      %p56 = por %p54, %p55
      %p57 = scmp.ne.s32.totalorder %s48, %s49
      %p58 = scmp.eq.s32.totalorder %s17, 0
      %p59 = por %p57, %p58
      %p60 = scmp.ne.s32.totalorder %s48, %s49
      %p61 = scmp.eq.s32.totalorder %s18, 3
      %p62 = por %p60, %p61
      %p64 = scmp.ne.s32.totalorder %s49, %s63
      %p65 = scmp.eq.s32.totalorder %s18, 0
      %p66 = por %p64, %p65
      %s68 = sadd.s32 %s67, 1
      %p71 = scmp.eq.s32.totalorder %s12, 3
      %p72 = scmp.ne.s32.totalorder %s67, %s69
      %p73 = scmp.eq.s32.totalorder %s12, 0
      %p74 = por %p72, %p73
      %p75 = scmp.ne.s32.totalorder %s67, %s69
      %p76 = scmp.eq.s32.totalorder %s17, 3
      %p77 = por %p75, %p76
      %p78 = scmp.ne.s32.totalorder %s69, %s70
      %p79 = scmp.eq.s32.totalorder %s17, 0
      %p80 = por %p78, %p79
      %p81 = scmp.ne.s32.totalorder %s69, %s70
      %p82 = scmp.eq.s32.totalorder %s18, 3
      %p83 = por %p81, %p82
      %p85 = scmp.ne.s32.totalorder %s70, %s84
      %p86 = scmp.eq.s32.totalorder %s18, 0
      %p87 = por %p85, %p86
      %s88 = ssub.s32 %s12, %s19
      %p89 = scmp.eq.s32.totalorder %s88, 0
      %s91 = sadd.s32 %s90, 1
      %s92 = scalar_select %p89, %s90, %s91
      %p95 = pneg %p89
      %p96 = scmp.eq.s32.totalorder %s12, 3
      %p97 = por %p95, %p96
      %p98 = scmp.ne.s32.totalorder %s90, %s93
      %p99 = scmp.eq.s32.totalorder %s12, 0
      %p100 = por %p98, %p99
      %p101 = scmp.ne.s32.totalorder %s90, %s93
      %p102 = scmp.eq.s32.totalorder %s17, 3
      %p103 = por %p101, %p102
      %p104 = scmp.ne.s32.totalorder %s93, %s94
      %p105 = scmp.eq.s32.totalorder %s17, 0
      %p106 = por %p104, %p105
      %p107 = scmp.ne.s32.totalorder %s93, %s94
      %p108 = scmp.eq.s32.totalorder %s18, 3
      %p109 = por %p107, %p108
      %p111 = scmp.ne.s32.totalorder %s94, %s110
      %p112 = scmp.eq.s32.totalorder %s18, 0
      %p113 = por %p111, %p112
      %p114 = scmp.le.s32.totalorder 1, %s12
      %p115 = scmp.lt.s32.totalorder %s12, 5
      %p116 = pnand %p114, %p115
      %p117 = pneg %p116
      // Predicated region
      $region9: #{proj_head_forward.5} parent=5 // pred_check
        _
      $region10: #{proj_head_forward.5} parent=5 // pred_check_branch
        %119 = sbr.rel (%p116) target = $region12
      $region11: #{proj_head_forward.5} parent=5 // pred_region
        %s120 = ssub.s32 %s12, 1
        // Predicated region
        $region13: #{proj_head_forward.5} parent=11 // pred_check
          %p121 = pneg %p59
        $region14: #{proj_head_forward.5} parent=11 // pred_check_branch
          %123 = sbr.rel (%p121) target = $region16
        $region15: #{proj_head_forward.5} parent=11 // pred_region
          _
        $region16: #{proj_head_forward.5} parent=11 // pred_fallthru
          _
        // Predicated region
        $region17: #{proj_head_forward.5} parent=11 // pred_check
          %p124 = pneg %p80
        $region18: #{proj_head_forward.5} parent=11 // pred_check_branch
          %126 = sbr.rel (%p124) target = $region20
        $region19: #{proj_head_forward.5} parent=11 // pred_region
          _
        $region20: #{proj_head_forward.5} parent=11 // pred_fallthru
          _
      $region12: #{proj_head_forward.5} parent=5 // pred_fallthru
        _
      %p127 = scmp.lt.s32.totalorder %s12, 4
      // Predicated region
      $region21: #{proj_head_forward.5} parent=5 // pred_check
        %p128 = pneg %p127
      $region22: #{proj_head_forward.5} parent=5 // pred_check_branch
        %130 = sbr.rel (%p128) target = $region24
      $region23: #{proj_head_forward.5} parent=5 // pred_region
        // Predicated region
        $region25: #{proj_head_forward.5} parent=23 // pred_check
          %p131 = pneg %p32
        $region26: #{proj_head_forward.5} parent=23 // pred_check_branch
          %133 = sbr.rel (%p131) target = $region28
        $region27: #{proj_head_forward.5} parent=23 // pred_region
          %s134 = smul.u32 2, %s12
          %p135 = scmp.lt.s32.totalorder %s134, 7
          %s136 = scalar_select %p135, %s134, 7
          %s137 = smul.addr %s136, 2
          %s138 = smul.addr %s137, 4
          %s139 = scalar_lea.vmem %s0, %s138
          %s140 = smul.u32 2, %s12
        $region28: #{proj_head_forward.5} parent=23 // pred_fallthru
          _
      $region24: #{proj_head_forward.5} parent=5 // pred_fallthru
        _
      %p141 = scmp.le.s32.totalorder 1, %s12
      %p142 = scmp.lt.s32.totalorder %s12, 5
      %p143 = pnand %p141, %p142
      %p144 = pneg %p143
      // Predicated region
      $region29: #{proj_head_forward.5} parent=5 // pred_check
        _
      $region30: #{proj_head_forward.5} parent=5 // pred_check_branch
        %146 = sbr.rel (%p143) target = $region32
      $region31: #{proj_head_forward.5} parent=5 // pred_region
        %s147 = ssub.s32 %s12, 1
        %s148 = smul.u32 2, %s17
        %p149 = scmp.lt.s32.totalorder %s148, 7
        %s150 = scalar_select %p149, %s148, 7
        %s151 = smul.addr %s150, 2
        %s152 = smul.addr %s151, 4
        %s153 = scalar_lea.vmem %s0, %s152
        %p154 = pneg %p38
        %p155 = pneg %p35
        %p156 = pneg %p59
        %p157 = pneg %p56
        %p158 = pneg %p80
        %p159 = pneg %p77
        %p160 = pneg %p106
        %p161 = pneg %p103
        %s162 = sand.u32 %s93, 1
        %s163 = scalar_lea.sflag [#allocation3], %s162
        %s164 = sand.u32 %s93, 1
        %s165 = smul.addr %s164, 32
        %s166 = scalar_lea.vmem [#allocation2], %s165
        %s167 = smul.u32 2, %s17
        %p168 = scmp.lt.s32.totalorder %s167, 7
        %s169 = scalar_select %p168, %s167, 7
        %s170 = smul.addr %s169, 2
        %s171 = smul.addr %s170, 4
        %s172 = scalar_lea.vmem %s0, %s171
        %s173 = smul.u32 2, %s17
        %s174 = smul.u32 2, %s17
        %v175 = vld [vmem:[%s172] sm:$0xff]
        %v176 = vld [vmem:[%s172 + $0x8] sm:$0xff]
        %v177 = vunpack.c.l.bf16 %v175
        %v178 = vunpack.c.h.bf16 %v175
        %v179 = vunpack.c.l.bf16 %v176
        %v180 = vunpack.c.h.bf16 %v176
        %v181 = vld [vmem:[%s1] sm:$0x3]
        %v183 = vperm.slane %v181, 0
        %v184 = vperm.slane %v181, 1
        %v187 = vmul.f32 %v177, %v183
        %v188 = vmul.f32 %v178, %v184
        %v189 = vmul.f32 %v179, %v183
        %v190 = vmul.f32 %v180, %v184
        %v191 = vld [vmem:[%s2] sm:$0x3]
        %v193 = vperm.slane %v191, 0
        %v194 = vperm.slane %v191, 1
        %v197 = vadd.f32 %v187, %v193
        %v198 = vadd.f32 %v188, %v194
        %v199 = vadd.f32 %v189, %v193
        %v200 = vadd.f32 %v190, %v194
        %201 = vst [vmem:[%s166] sm:$0xff] %v197
        %202 = vst [vmem:[%s166 + $0x8] sm:$0xff] %v198
        %203 = vst [vmem:[%s166 + $0x10] sm:$0xff] %v199
        %204 = vst [vmem:[%s166 + $0x18] sm:$0xff] %v200
        %s205 = sand.u32 %s93, 1
        %s206 = scalar_lea.sflag [#allocation3], %s205
        %s207 = sand.u32 %s93, 1
        %s208 = smul.addr %s207, 32
        %s209 = scalar_lea.vmem [#allocation2], %s208
        // Predicated region
        $region33: #{proj_head_forward.5} parent=31 // pred_check
          %p210 = pneg %p103
        $region34: #{proj_head_forward.5} parent=31 // pred_check_branch
          %212 = sbr.rel (%p210) target = $region36
        $region35: #{proj_head_forward.5} parent=31 // pred_region
          %s213 = smul.u32 2, %s17
          %215 = vsyncadd %s206, 0
          %s216 = smul.addr %s213, 2
          %s217 = smul.addr %s216, 8
          %s218 = scalar_lea.hbm %s3, %s217
          %s219 = sshll.u32 %s209, 4
          %s220 = int_to_ptr.vmem [resolvable:$true] %s219
          %s221 = sshll.u32 %s218, 4
          %s222 = int_to_ptr.hbm [resolvable:$true] %s221
          %227 = dma.vmem_to_hbm [thread:$0]  %s220, 512, %s222, %s206, 256, 256, 16
        $region36: #{proj_head_forward.5} parent=31 // pred_fallthru
          _
      $region32: #{proj_head_forward.5} parent=5 // pred_fallthru
        _
      %p228 = scmp.le.s32.totalorder 2, %s12
      // Predicated region
      $region37: #{proj_head_forward.5} parent=5 // pred_check
        %p229 = pneg %p228
      $region38: #{proj_head_forward.5} parent=5 // pred_check_branch
        %231 = sbr.rel (%p229) target = $region40
      $region39: #{proj_head_forward.5} parent=5 // pred_region
        %s232 = ssub.s32 %s12, 2
        // Predicated region
        $region41: #{proj_head_forward.5} parent=39 // pred_check
          %p233 = pneg %p109
        $region42: #{proj_head_forward.5} parent=39 // pred_check_branch
          %235 = sbr.rel (%p233) target = $region44
        $region43: #{proj_head_forward.5} parent=39 // pred_region
          %s236 = sand.u32 %s94, 1
          %s237 = scalar_lea.sflag [#allocation3], %s236
          %s238 = sand.u32 %s94, 1
          %s239 = smul.addr %s238, 32
          %s240 = scalar_lea.vmem [#allocation2], %s239
          %242 = dma.done %s237, 512
        $region44: #{proj_head_forward.5} parent=39 // pred_fallthru
          _
      $region40: #{proj_head_forward.5} parent=5 // pred_fallthru
        _
    $region6: #{proj_head_forward.5} parent=1 // loop_footer
      %s16 = sadd.s32 1, %s12
    $region7: #{proj_head_forward.5} parent=1 // loop_footer_branch
      %11 = sbr.rel target = $region3
    $region8: #{proj_head_forward.5} parent=1 // loop_exit
      _
    %243 = vsyncpa [#allocation3], 1
    %s244 = scalar_lea.sflag [#allocation3], 1
    %245 = vsyncpa %s244, 1

// kernel: proj_head_forward.4
$region0: #{proj_head_forward.4}
  #allocation0 [shape = 'u32[]', space=smem, size = 0x4, offset = 0x4, fixed_abs, tag = 'smem constant byte address 0x4 - core index']
  #allocation1 [shape = 'u32[72,128]{1,0:T(1,128)}', space=vmem, size = 0x9000, scoped, tag = 'internal scratch']
  %s0 = inlined_call_operand.vmem [shape: bf16[64,128], index: 0, kind: input, shape index: {}]
  %s1 = inlined_call_operand.vmem [shape: f32[1,128], index: 1, kind: input, shape index: {}]
  %s2 = inlined_call_operand.vmem [shape: f32[1,128], index: 2, kind: input, shape index: {}]
  %s3 = inlined_call_operand.vmem [shape: bf16[128,256], index: 3, kind: input, shape index: {}]
  %s4 = inlined_call_operand.vmem [shape: f32[1,256], index: 4, kind: input, shape index: {}]
  %s5 = inlined_call_operand.vmem [shape: f32[1,256], index: 5, kind: input, shape index: {}]
  %s6 = inlined_call_operand.vmem [shape: bf16[64,256], index: 6, kind: output, shape index: {0}]
  %s7 = inlined_call_operand.vmem [shape: f32[1,256], index: 7, kind: output, shape index: {1}]
  %s8 = inlined_call_operand.vmem [shape: f32[1,256], index: 8, kind: output, shape index: {2}]
  %9 = xla_tuple %s6, %s7, %s8
  %s10 = sld [smem:[#allocation0]]
  $region81: #{proj_head_forward.4} parent=0
    _
  %s12 = ssub.s32 1, %s10
  %s13 = scalar_select 0, %s12, %s10
  loop: start=0, step=1, limit=6
  $region2: #{proj_head_forward.4} parent=0 // loop_pre_header
    _
  $region3: #{proj_head_forward.4} parent=0 // loop_header
    %s15 = sphi 0, %s19
    %p16 = scmp.ge.s32.totalorder %s15, 6
    %s25 = sphi 0, %s27
    %s28 = sphi 0, %s25
    %s29 = sphi 0, %s28
    %s45 = sphi 0, %s29
    %s49 = sphi 0, %s49
    %s51 = sphi 0, %s49
    %s52 = sphi 0, %s51
    %s66 = sphi 0, %s52
    %s70 = sphi 0, %s70
    %s72 = sphi 0, %s70
    %s73 = sphi 0, %s72
    %s87 = sphi 0, %s73
    %s91 = sphi 0, %s91
    %s93 = sphi 0, %s91
    %s94 = sphi 0, %s93
    %s108 = sphi 0, %s94
    %s112 = sphi 0, %s112
    %s114 = sphi 0, %s112
    %s115 = sphi 0, %s114
    %s129 = sphi 0, %s115
    %s133 = sphi 0, %s133
    %s135 = sphi 0, %s133
    %s136 = sphi 0, %s135
    %s150 = sphi 0, %s136
    %s156 = sphi 0, %s158
    %s159 = sphi 0, %s156
    %s160 = sphi 0, %s159
    %s176 = sphi 0, %s160
    %s180 = sphi 0, %s180
    %s182 = sphi 0, %s180
    %s183 = sphi 0, %s182
    %s197 = sphi 0, %s183
    %s201 = sphi 0, %s201
    %s203 = sphi 0, %s201
    %s204 = sphi 0, %s203
    %s218 = sphi 0, %s204
  $region4: #{proj_head_forward.4} parent=0 // loop_header_branch
    %18 = sbr.rel (%p16) target = $region8
  $region5: #{proj_head_forward.4} parent=0 // loop_body
    %s20 = ssub.s32 %s15, 1
    %s21 = ssub.s32 %s15, 2
    %s22 = sadd.s32 %s15, 1
    %s23 = ssub.s32 %s15, %s22
    %p24 = scmp.eq.s32.totalorder %s23, 0
    %s26 = sadd.s32 %s25, 1
    %s27 = scalar_select %p24, %s25, %s26
    %p30 = pneg %p24
    %p31 = scmp.eq.s32.totalorder %s15, 3
    %p32 = por %p30, %p31
    %p33 = scmp.ne.s32.totalorder %s25, %s28
    %p34 = scmp.eq.s32.totalorder %s15, 0
    %p35 = por %p33, %p34
    %p36 = scmp.ne.s32.totalorder %s25, %s28
    %p37 = scmp.eq.s32.totalorder %s20, 3
    %p38 = por %p36, %p37
    %p39 = scmp.ne.s32.totalorder %s28, %s29
    %p40 = scmp.eq.s32.totalorder %s20, 0
    %p41 = por %p39, %p40
    %p42 = scmp.ne.s32.totalorder %s28, %s29
    %p43 = scmp.eq.s32.totalorder %s21, 3
    %p44 = por %p42, %p43
    %p46 = scmp.ne.s32.totalorder %s29, %s45
    %p47 = scmp.eq.s32.totalorder %s21, 0
    %p48 = por %p46, %p47
    %s50 = sadd.s32 %s49, 1
    %p53 = scmp.eq.s32.totalorder %s15, 3
    %p54 = scmp.ne.s32.totalorder %s49, %s51
    %p55 = scmp.eq.s32.totalorder %s15, 0
    %p56 = por %p54, %p55
    %p57 = scmp.ne.s32.totalorder %s49, %s51
    %p58 = scmp.eq.s32.totalorder %s20, 3
    %p59 = por %p57, %p58
    %p60 = scmp.ne.s32.totalorder %s51, %s52
    %p61 = scmp.eq.s32.totalorder %s20, 0
    %p62 = por %p60, %p61
    %p63 = scmp.ne.s32.totalorder %s51, %s52
    %p64 = scmp.eq.s32.totalorder %s21, 3
    %p65 = por %p63, %p64
    %p67 = scmp.ne.s32.totalorder %s52, %s66
    %p68 = scmp.eq.s32.totalorder %s21, 0
    %p69 = por %p67, %p68
    %s71 = sadd.s32 %s70, 1
    %p74 = scmp.eq.s32.totalorder %s15, 3
    %p75 = scmp.ne.s32.totalorder %s70, %s72
    %p76 = scmp.eq.s32.totalorder %s15, 0
    %p77 = por %p75, %p76
    %p78 = scmp.ne.s32.totalorder %s70, %s72
    %p79 = scmp.eq.s32.totalorder %s20, 3
    %p80 = por %p78, %p79
    %p81 = scmp.ne.s32.totalorder %s72, %s73
    %p82 = scmp.eq.s32.totalorder %s20, 0
    %p83 = por %p81, %p82
    %p84 = scmp.ne.s32.totalorder %s72, %s73
    %p85 = scmp.eq.s32.totalorder %s21, 3
    %p86 = por %p84, %p85
    %p88 = scmp.ne.s32.totalorder %s73, %s87
    %p89 = scmp.eq.s32.totalorder %s21, 0
    %p90 = por %p88, %p89
    %s92 = sadd.s32 %s91, 1
    %p95 = scmp.eq.s32.totalorder %s15, 3
    %p96 = scmp.ne.s32.totalorder %s91, %s93
    %p97 = scmp.eq.s32.totalorder %s15, 0
    %p98 = por %p96, %p97
    %p99 = scmp.ne.s32.totalorder %s91, %s93
    %p100 = scmp.eq.s32.totalorder %s20, 3
    %p101 = por %p99, %p100
    %p102 = scmp.ne.s32.totalorder %s93, %s94
    %p103 = scmp.eq.s32.totalorder %s20, 0
    %p104 = por %p102, %p103
    %p105 = scmp.ne.s32.totalorder %s93, %s94
    %p106 = scmp.eq.s32.totalorder %s21, 3
    %p107 = por %p105, %p106
    %p109 = scmp.ne.s32.totalorder %s94, %s108
    %p110 = scmp.eq.s32.totalorder %s21, 0
    %p111 = por %p109, %p110
    %s113 = sadd.s32 %s112, 1
    %p116 = scmp.eq.s32.totalorder %s15, 3
    %p117 = scmp.ne.s32.totalorder %s112, %s114
    %p118 = scmp.eq.s32.totalorder %s15, 0
    %p119 = por %p117, %p118
    %p120 = scmp.ne.s32.totalorder %s112, %s114
    %p121 = scmp.eq.s32.totalorder %s20, 3
    %p122 = por %p120, %p121
    %p123 = scmp.ne.s32.totalorder %s114, %s115
    %p124 = scmp.eq.s32.totalorder %s20, 0
    %p125 = por %p123, %p124
    %p126 = scmp.ne.s32.totalorder %s114, %s115
    %p127 = scmp.eq.s32.totalorder %s21, 3
    %p128 = por %p126, %p127
    %p130 = scmp.ne.s32.totalorder %s115, %s129
    %p131 = scmp.eq.s32.totalorder %s21, 0
    %p132 = por %p130, %p131
    %s134 = sadd.s32 %s133, 1
    %p137 = scmp.eq.s32.totalorder %s15, 3
    %p138 = scmp.ne.s32.totalorder %s133, %s135
    %p139 = scmp.eq.s32.totalorder %s15, 0
    %p140 = por %p138, %p139
    %p141 = scmp.ne.s32.totalorder %s133, %s135
    %p142 = scmp.eq.s32.totalorder %s20, 3
    %p143 = por %p141, %p142
    %p144 = scmp.ne.s32.totalorder %s135, %s136
    %p145 = scmp.eq.s32.totalorder %s20, 0
    %p146 = por %p144, %p145
    %p147 = scmp.ne.s32.totalorder %s135, %s136
    %p148 = scmp.eq.s32.totalorder %s21, 3
    %p149 = por %p147, %p148
    %p151 = scmp.ne.s32.totalorder %s136, %s150
    %p152 = scmp.eq.s32.totalorder %s21, 0
    %p153 = por %p151, %p152
    %s154 = ssub.s32 %s15, %s22
    %p155 = scmp.eq.s32.totalorder %s154, 0
    %s157 = sadd.s32 %s156, 1
    %s158 = scalar_select %p155, %s156, %s157
    %p161 = pneg %p155
    %p162 = scmp.eq.s32.totalorder %s15, 3
    %p163 = por %p161, %p162
    %p164 = scmp.ne.s32.totalorder %s156, %s159
    %p165 = scmp.eq.s32.totalorder %s15, 0
    %p166 = por %p164, %p165
    %p167 = scmp.ne.s32.totalorder %s156, %s159
    %p168 = scmp.eq.s32.totalorder %s20, 3
    %p169 = por %p167, %p168
    %p170 = scmp.ne.s32.totalorder %s159, %s160
    %p171 = scmp.eq.s32.totalorder %s20, 0
    %p172 = por %p170, %p171
    %p173 = scmp.ne.s32.totalorder %s159, %s160
    %p174 = scmp.eq.s32.totalorder %s21, 3
    %p175 = por %p173, %p174
    %p177 = scmp.ne.s32.totalorder %s160, %s176
    %p178 = scmp.eq.s32.totalorder %s21, 0
    %p179 = por %p177, %p178
    %s181 = sadd.s32 %s180, 1
    %p184 = scmp.eq.s32.totalorder %s15, 3
    %p185 = scmp.ne.s32.totalorder %s180, %s182
    %p186 = scmp.eq.s32.totalorder %s15, 0
    %p187 = por %p185, %p186
    %p188 = scmp.ne.s32.totalorder %s180, %s182
    %p189 = scmp.eq.s32.totalorder %s20, 3
    %p190 = por %p188, %p189
    %p191 = scmp.ne.s32.totalorder %s182, %s183
    %p192 = scmp.eq.s32.totalorder %s20, 0
    %p193 = por %p191, %p192
    %p194 = scmp.ne.s32.totalorder %s182, %s183
    %p195 = scmp.eq.s32.totalorder %s21, 3
    %p196 = por %p194, %p195
    %p198 = scmp.ne.s32.totalorder %s183, %s197
    %p199 = scmp.eq.s32.totalorder %s21, 0
    %p200 = por %p198, %p199
    %s202 = sadd.s32 %s201, 1
    %p205 = scmp.eq.s32.totalorder %s15, 3
    %p206 = scmp.ne.s32.totalorder %s201, %s203
    %p207 = scmp.eq.s32.totalorder %s15, 0
    %p208 = por %p206, %p207
    %p209 = scmp.ne.s32.totalorder %s201, %s203
    %p210 = scmp.eq.s32.totalorder %s20, 3
    %p211 = por %p209, %p210
    %p212 = scmp.ne.s32.totalorder %s203, %s204
    %p213 = scmp.eq.s32.totalorder %s20, 0
    %p214 = por %p212, %p213
    %p215 = scmp.ne.s32.totalorder %s203, %s204
    %p216 = scmp.eq.s32.totalorder %s21, 3
    %p217 = por %p215, %p216
    %p219 = scmp.ne.s32.totalorder %s204, %s218
    %p220 = scmp.eq.s32.totalorder %s21, 0
    %p221 = por %p219, %p220
    %p222 = scmp.le.s32.totalorder 1, %s15
    %p223 = scmp.lt.s32.totalorder %s15, 5
    %p224 = pnand %p222, %p223
    %p225 = pneg %p224
    // Predicated region
    $region9: #{proj_head_forward.4} parent=5 // pred_check
      _
    $region10: #{proj_head_forward.4} parent=5 // pred_check_branch
      %227 = sbr.rel (%p224) target = $region12
    $region11: #{proj_head_forward.4} parent=5 // pred_region
      %s228 = ssub.s32 %s15, 1
      // Predicated region
      $region13: #{proj_head_forward.4} parent=11 // pred_check
        %p229 = pneg %p62
      $region14: #{proj_head_forward.4} parent=11 // pred_check_branch
        %231 = sbr.rel (%p229) target = $region16
      $region15: #{proj_head_forward.4} parent=11 // pred_region
        _
      $region16: #{proj_head_forward.4} parent=11 // pred_fallthru
        _
      // Predicated region
      $region17: #{proj_head_forward.4} parent=11 // pred_check
        %p232 = pneg %p83
      $region18: #{proj_head_forward.4} parent=11 // pred_check_branch
        %234 = sbr.rel (%p232) target = $region20
      $region19: #{proj_head_forward.4} parent=11 // pred_region
        _
      $region20: #{proj_head_forward.4} parent=11 // pred_fallthru
        _
      // Predicated region
      $region21: #{proj_head_forward.4} parent=11 // pred_check
        %p235 = pneg %p104
      $region22: #{proj_head_forward.4} parent=11 // pred_check_branch
        %237 = sbr.rel (%p235) target = $region24
      $region23: #{proj_head_forward.4} parent=11 // pred_region
        _
      $region24: #{proj_head_forward.4} parent=11 // pred_fallthru
        _
      // Predicated region
      $region25: #{proj_head_forward.4} parent=11 // pred_check
        %p238 = pneg %p125
      $region26: #{proj_head_forward.4} parent=11 // pred_check_branch
        %240 = sbr.rel (%p238) target = $region28
      $region27: #{proj_head_forward.4} parent=11 // pred_region
        _
      $region28: #{proj_head_forward.4} parent=11 // pred_fallthru
        _
      // Predicated region
      $region29: #{proj_head_forward.4} parent=11 // pred_check
        %p241 = pneg %p146
      $region30: #{proj_head_forward.4} parent=11 // pred_check_branch
        %243 = sbr.rel (%p241) target = $region32
      $region31: #{proj_head_forward.4} parent=11 // pred_region
        _
      $region32: #{proj_head_forward.4} parent=11 // pred_fallthru
        _
    $region12: #{proj_head_forward.4} parent=5 // pred_fallthru
      _
    %p244 = scmp.lt.s32.totalorder %s15, 4
    // Predicated region
    $region33: #{proj_head_forward.4} parent=5 // pred_check
      %p245 = pneg %p244
    $region34: #{proj_head_forward.4} parent=5 // pred_check_branch
      %247 = sbr.rel (%p245) target = $region36
    $region35: #{proj_head_forward.4} parent=5 // pred_region
      // Predicated region
      $region37: #{proj_head_forward.4} parent=35 // pred_check
        %p248 = pneg %p35
      $region38: #{proj_head_forward.4} parent=35 // pred_check_branch
        %250 = sbr.rel (%p248) target = $region40
      $region39: #{proj_head_forward.4} parent=35 // pred_region
        %s251 = smul.u32 2, %s15
        %p252 = scmp.lt.s32.totalorder %s251, 7
        %s253 = scalar_select %p252, %s251, 7
        %s254 = smul.addr %s253, 4
        %s255 = scalar_lea.vmem %s0, %s254
        %s256 = smul.u32 2, %s15
      $region40: #{proj_head_forward.4} parent=35 // pred_fallthru
        _
    $region36: #{proj_head_forward.4} parent=5 // pred_fallthru
      _
    %p257 = scmp.le.s32.totalorder 1, %s15
    %p258 = scmp.lt.s32.totalorder %s15, 5
    %p259 = pnand %p257, %p258
    %p260 = pneg %p259
    // Predicated region
    $region41: #{proj_head_forward.4} parent=5 // pred_check
      _
    $region42: #{proj_head_forward.4} parent=5 // pred_check_branch
      %262 = sbr.rel (%p259) target = $region44
    $region43: #{proj_head_forward.4} parent=5 // pred_region
      %s263 = ssub.s32 %s15, 1
      %s264 = smul.u32 2, %s20
      %p265 = scmp.lt.s32.totalorder %s264, 7
      %s266 = scalar_select %p265, %s264, 7
      %s267 = smul.addr %s266, 4
      %s268 = scalar_lea.vmem %s0, %s267
      %p269 = pneg %p41
      %p270 = pneg %p38
      %p271 = pneg %p62
      %p272 = pneg %p59
      %p273 = pneg %p83
      %p274 = pneg %p80
      %p275 = pneg %p104
      %p276 = pneg %p101
      %p277 = pneg %p125
      %p278 = pneg %p122
      %p279 = pneg %p146
      %p280 = pneg %p143
      %p281 = pneg %p172
      %p282 = pneg %p169
      %s283 = smul.u32 2, %s20
      %p284 = scmp.lt.s32.totalorder %s283, 7
      %s285 = scalar_select %p284, %s283, 7
      %s286 = smul.addr %s285, 2
      %s287 = smul.addr %s286, 4
      %s288 = scalar_lea.vmem %s6, %s287
      %p289 = pneg %p193
      %p290 = pneg %p190
      %p291 = pneg %p214
      %p292 = pneg %p211
      %s293 = smul.u32 2, %s20
      %p294 = scmp.lt.s32.totalorder %s293, 7
      %s295 = scalar_select %p294, %s293, 7
      %s296 = smul.addr %s295, 4
      %s297 = scalar_lea.vmem %s0, %s296
      %s298 = smul.u32 2, %s20
      %s299 = smul.u32 2, %s20
      %p300 = scmp.lt.s32.totalorder %s299, 7
      %s301 = scalar_select %p300, %s299, 7
      %s302 = smul.addr %s301, 2
      %s303 = smul.addr %s302, 4
      %s304 = scalar_lea.vmem %s6, %s303
      %s305 = smul.u32 2, %s20
      %p306 = scmp.eq.s32.totalorder %s20, 0
      // Predicated region
      $region45: #{proj_head_forward.4} parent=43 // pred_check
        %p307 = pneg %p306
      $region46: #{proj_head_forward.4} parent=43 // pred_check_branch
        %309 = sbr.rel (%p307) target = $region48
      $region47: #{proj_head_forward.4} parent=43 // pred_region
        %v310 = vlaneseq
        %vm311 = vcmp.ge.s32.totalorder %v310, 0
        %vm312 = vcmp.lt.s32.totalorder %v310, 256
        %vm313 = vmand %vm311, %vm312
        %314 = vst.msk [vmem:[%s7] sm:$0x3] %vm313, 0.0
        %315 = vst.msk [vmem:[%s8] sm:$0x3] %vm313, 0.0
      $region48: #{proj_head_forward.4} parent=43 // pred_fallthru
        _
      %v316 = vld [vmem:[%s297] sm:$0xf]
      %v317 = vld [vmem:[%s297 + $0x4] sm:$0xf]
      %v318 = vunpack.c.l.bf16 %v316
      %v319 = vunpack.c.l.bf16 %v317
      %v320 = vld [vmem:[%s1] sm:$0x1]
      %v322 = vperm.slane %v320, 0
      %v324 = vmul.f32 %v318, %v322
      %v325 = vmul.f32 %v319, %v322
      %v326 = vld [vmem:[%s2] sm:$0x1]
      %v328 = vperm.slane %v326, 0
      %v330 = vadd.f32 %v324, %v328
      %v331 = vadd.f32 %v325, %v328
      %v332 = vmax.f32 %v330, 0.0
      %v333 = vmax.f32 %v331, 0.0
      %v334 = vpack.c.bf16 %v333, %v332
      %v335 = vld [vmem:[%s3] sm:$0xff]
      %v336 = vld [vmem:[%s3 + $0x8] sm:$0xff]
      %v337 = vld [vmem:[%s3 + $0x10] sm:$0xff]
      %v338 = vld [vmem:[%s3 + $0x18] sm:$0xff]
      %v339 = vld [vmem:[%s3 + $0x20] sm:$0xff]
      %v340 = vld [vmem:[%s3 + $0x28] sm:$0xff]
      %v341 = vld [vmem:[%s3 + $0x30] sm:$0xff]
      %v342 = vld [vmem:[%s3 + $0x38] sm:$0xff]
      %v343 = vld [vmem:[%s3 + $0x40] sm:$0xff]
      %v344 = vld [vmem:[%s3 + $0x48] sm:$0xff]
      %v345 = vld [vmem:[%s3 + $0x50] sm:$0xff]
      %v346 = vld [vmem:[%s3 + $0x58] sm:$0xff]
      %v347 = vld [vmem:[%s3 + $0x60] sm:$0xff]
      %v348 = vld [vmem:[%s3 + $0x68] sm:$0xff]
      %v349 = vld [vmem:[%s3 + $0x70] sm:$0xff]
      %v350 = vld [vmem:[%s3 + $0x78] sm:$0xff]
      %v367 = vunpack.c.l.b16 %v335
      %v368 = vunpack.c.h.b16 %v335
      %v369 = vunpack.c.l.b16 %v336
      %v370 = vunpack.c.h.b16 %v336
      %v371 = vunpack.c.l.b16 %v337
      %v372 = vunpack.c.h.b16 %v337
      %v373 = vunpack.c.l.b16 %v338
      %v374 = vunpack.c.h.b16 %v338
      %v375 = vunpack.c.l.b16 %v339
      %v376 = vunpack.c.h.b16 %v339
      %v377 = vunpack.c.l.b16 %v340
      %v378 = vunpack.c.h.b16 %v340
      %v379 = vunpack.c.l.b16 %v341
      %v380 = vunpack.c.h.b16 %v341
      %v381 = vunpack.c.l.b16 %v342
      %v382 = vunpack.c.h.b16 %v342
      %v383 = vunpack.c.l.b16 %v343
      %v384 = vunpack.c.h.b16 %v343
      %v385 = vunpack.c.l.b16 %v344
      %v386 = vunpack.c.h.b16 %v344
      %v387 = vunpack.c.l.b16 %v345
      %v388 = vunpack.c.h.b16 %v345
      %v389 = vunpack.c.l.b16 %v346
      %v390 = vunpack.c.h.b16 %v346
      %v391 = vunpack.c.l.b16 %v347
      %v392 = vunpack.c.h.b16 %v347
      %v393 = vunpack.c.l.b16 %v348
      %v394 = vunpack.c.h.b16 %v348
      %v395 = vunpack.c.l.b16 %v349
      %v396 = vunpack.c.h.b16 %v349
      %v397 = vunpack.c.l.b16 %v350
      %v398 = vunpack.c.h.b16 %v350
      %v399 = vpack.c.b16 %v369, %v367
      %v400 = vpack.c.b16 %v370, %v368
      %v401 = vpack.c.b16 %v373, %v371
      %v402 = vpack.c.b16 %v374, %v372
      %v403 = vpack.c.b16 %v377, %v375
      %v404 = vpack.c.b16 %v378, %v376
      %v405 = vpack.c.b16 %v381, %v379
      %v406 = vpack.c.b16 %v382, %v380
      %v407 = vpack.c.b16 %v385, %v383
      %v408 = vpack.c.b16 %v386, %v384
      %v409 = vpack.c.b16 %v389, %v387
      %v410 = vpack.c.b16 %v390, %v388
      %v411 = vpack.c.b16 %v393, %v391
      %v412 = vpack.c.b16 %v394, %v392
      %v413 = vpack.c.b16 %v397, %v395
      %v414 = vpack.c.b16 %v398, %v396
      %431 = vmatpush.bf16.msra.mxu0 %v413
      %432 = vmatpush.bf16.msra.mxu0 %v411
      %433 = vmatpush.bf16.msra.mxu0 %v409
      %434 = vmatpush.bf16.msra.mxu0 %v407
      %435 = vmatpush.bf16.msra.mxu0 %v405
      %436 = vmatpush.bf16.msra.mxu0 %v403
      %437 = vmatpush.bf16.msra.mxu0 %v401
      %438 = vmatpush.bf16.msra.mxu0 %v399
      %439 = vmatmul.bf16.gmra.mxu0 %v334
      %v440 = vpop.f32.mrf.mxu0
      %v441 = vadd.f32 0.0, %v440
      %v442 = vpop.f32.mrf.mxu0
      %v443 = vadd.f32 0.0, %v442
      %444 = vdwg.mxu0
      %445 = vmatpush.bf16.msra.mxu0 %v414
      %446 = vmatpush.bf16.msra.mxu0 %v412
      %447 = vmatpush.bf16.msra.mxu0 %v410
      %448 = vmatpush.bf16.msra.mxu0 %v408
      %449 = vmatpush.bf16.msra.mxu0 %v406
      %450 = vmatpush.bf16.msra.mxu0 %v404
      %451 = vmatpush.bf16.msra.mxu0 %v402
      %452 = vmatpush.bf16.msra.mxu0 %v400
      %453 = vmatmul.bf16.gmra.mxu0 %v334
      %v454 = vpop.f32.mrf.mxu0
      %v455 = vadd.f32 0.0, %v454
      %v456 = vpop.f32.mrf.mxu0
      %v457 = vadd.f32 0.0, %v456
      %458 = vdwg.mxu0
      %v459 = vpack.c.bf16 %v455, %v441
      %v460 = vpack.c.bf16 %v457, %v443
      %461 = vst [vmem:[%s304] sm:$0xff] %v459
      %462 = vst [vmem:[%s304 + $0x8] sm:$0xff] %v460
      %v463 = vld [vmem:[%s7] sm:$0x3]
      %v464 = vadd.f32 %v441, %v443
      %v465 = vrot.slane %v464, 4
      %v466 = vadd.f32 %v464, %v465
      %v467 = vrot.slane %v466, 2
      %v468 = vadd.f32 %v466, %v467
      %v469 = vrot.slane %v468, 1
      %v470 = vadd.f32 %v468, %v469
      %v471 = vadd.f32 %v455, %v457
      %v472 = vrot.slane %v471, 4
      %v473 = vadd.f32 %v471, %v472
      %v474 = vrot.slane %v473, 2
      %v475 = vadd.f32 %v473, %v474
      %v476 = vrot.slane %v475, 1
      %v477 = vadd.f32 %v475, %v476
      %v480 = vrot.slane %v477, 7
      %vm481 = vcmask 1040384
      %v482 = vsel %vm481, %v470, %v480
      %v484 = vadd.f32 %v463, %v482
      %v485 = vlaneseq
      %vm486 = vcmp.ge.s32.totalorder %v485, 0
      %vm487 = vcmp.lt.s32.totalorder %v485, 256
      %vm488 = vmand %vm486, %vm487
      %489 = vst.msk [vmem:[%s7] sm:$0x3] %vm488, %v484
      %v490 = vld [vmem:[%s8] sm:$0x3]
      %v491 = vmul.f32 %v441, %v441
      %v492 = vmul.f32 %v455, %v455
      %v493 = vmul.f32 %v443, %v443
      %v494 = vmul.f32 %v457, %v457
      %v495 = vadd.f32 %v491, %v493
      %v496 = vrot.slane %v495, 4
      %v497 = vadd.f32 %v495, %v496
      %v498 = vrot.slane %v497, 2
      %v499 = vadd.f32 %v497, %v498
      %v500 = vrot.slane %v499, 1
      %v501 = vadd.f32 %v499, %v500
      %v502 = vadd.f32 %v492, %v494
      %v503 = vrot.slane %v502, 4
      %v504 = vadd.f32 %v502, %v503
      %v505 = vrot.slane %v504, 2
      %v506 = vadd.f32 %v504, %v505
      %v507 = vrot.slane %v506, 1
      %v508 = vadd.f32 %v506, %v507
      %v511 = vrot.slane %v508, 7
      %v512 = vsel %vm481, %v501, %v511
      %v514 = vadd.f32 %v490, %v512
      %515 = vst.msk [vmem:[%s8] sm:$0x3] %vm488, %v514
      %p516 = scmp.eq.s32.totalorder %s20, 3
      // Predicated region
      $region49: #{proj_head_forward.4} parent=43 // pred_check
        %p517 = pneg %p516
      $region50: #{proj_head_forward.4} parent=43 // pred_check_branch
        %519 = sbr.rel (%p517) target = $region52
      $region51: #{proj_head_forward.4} parent=43 // pred_region
        %v520 = vld [vmem:[%s7] sm:$0x3]
        %v521 = vld [vmem:[%s8] sm:$0x3]
        %v522 = vmul.f32 %v520, 0.015625
        %v523 = vmul.f32 %v521, 0.015625
        %v524 = vmul.f32 %v522, %v522
        %v525 = vsub.f32 %v523, %v524
        %v526 = vld [vmem:[%s4] sm:$0x3]
        %v527 = vadd.f32 %v525, 1e-05
        %v528 = vrsqrt.pop %v527
        %v529 = vmul.f32 %v528, %v527
        %v530 = vmul.f32 %v529, %v528
        %v531 = vmul.f32 0.5, %v530
        %v532 = vsub.f32 1.5, %v531
        %v533 = vmul.f32 %v528, %v532
        %vm534 = vweird.f32 %v527
        %vm535 = vweird.f32 %v528
        %vm536 = vmor %vm534, %vm535
        %v537 = vsel %vm536, %v528, %v533
        %v538 = vmul.f32 %v526, %v537
        %539 = vst.msk [vmem:[%s7] sm:$0x3] %vm488, %v538
        %v540 = vld [vmem:[%s5] sm:$0x3]
        %v541 = vmul.f32 %v522, %v538
        %v542 = vsub.f32 %v540, %v541
        %543 = vst.msk [vmem:[%s8] sm:$0x3] %vm488, %v542
      $region52: #{proj_head_forward.4} parent=43 // pred_fallthru
        _
      %s544 = smul.u32 2, %s20
      %p545 = scmp.lt.s32.totalorder %s544, 7
      %s546 = scalar_select %p545, %s544, 7
      %s547 = smul.addr %s546, 2
      %s548 = smul.addr %s547, 4
      %s549 = scalar_lea.vmem %s6, %s548
      // Predicated region
      $region53: #{proj_head_forward.4} parent=43 // pred_check
        %p550 = pneg %p169
      $region54: #{proj_head_forward.4} parent=43 // pred_check_branch
        %552 = sbr.rel (%p550) target = $region56
      $region55: #{proj_head_forward.4} parent=43 // pred_region
        %s553 = smul.u32 2, %s20
      $region56: #{proj_head_forward.4} parent=43 // pred_fallthru
        _
      // Predicated region
      $region57: #{proj_head_forward.4} parent=43 // pred_check
        %p554 = pneg %p190
      $region58: #{proj_head_forward.4} parent=43 // pred_check_branch
        %556 = sbr.rel (%p554) target = $region60
      $region59: #{proj_head_forward.4} parent=43 // pred_region
        _
      $region60: #{proj_head_forward.4} parent=43 // pred_fallthru
        _
      // Predicated region
      $region61: #{proj_head_forward.4} parent=43 // pred_check
        %p557 = pneg %p211
      $region62: #{proj_head_forward.4} parent=43 // pred_check_branch
        %559 = sbr.rel (%p557) target = $region64
      $region63: #{proj_head_forward.4} parent=43 // pred_region
        _
      $region64: #{proj_head_forward.4} parent=43 // pred_fallthru
        _
      // Predicated region
      $region65: #{proj_head_forward.4} parent=43 // pred_check
        %p560 = pneg %p190
      $region66: #{proj_head_forward.4} parent=43 // pred_check_branch
        %562 = sbr.rel (%p560) target = $region68
      $region67: #{proj_head_forward.4} parent=43 // pred_region
        _
      $region68: #{proj_head_forward.4} parent=43 // pred_fallthru
        _
      // Predicated region
      $region69: #{proj_head_forward.4} parent=43 // pred_check
        %p563 = pneg %p211
      $region70: #{proj_head_forward.4} parent=43 // pred_check_branch
        %565 = sbr.rel (%p563) target = $region72
      $region71: #{proj_head_forward.4} parent=43 // pred_region
        _
      $region72: #{proj_head_forward.4} parent=43 // pred_fallthru
        _
    $region44: #{proj_head_forward.4} parent=5 // pred_fallthru
      _
    %p566 = scmp.le.s32.totalorder 2, %s15
    // Predicated region
    $region73: #{proj_head_forward.4} parent=5 // pred_check
      %p567 = pneg %p566
    $region74: #{proj_head_forward.4} parent=5 // pred_check_branch
      %569 = sbr.rel (%p567) target = $region76
    $region75: #{proj_head_forward.4} parent=5 // pred_region
      %s570 = ssub.s32 %s15, 2
      // Predicated region
      $region77: #{proj_head_forward.4} parent=75 // pred_check
        %p571 = pneg %p175
      $region78: #{proj_head_forward.4} parent=75 // pred_check_branch
        %573 = sbr.rel (%p571) target = $region80
      $region79: #{proj_head_forward.4} parent=75 // pred_region
        %s574 = smul.u32 2, %s21
        %p575 = scmp.lt.s32.totalorder %s574, 7
        %s576 = scalar_select %p575, %s574, 7
        %s577 = smul.addr %s576, 2
        %s578 = smul.addr %s577, 4
        %s579 = scalar_lea.vmem %s6, %s578
      $region80: #{proj_head_forward.4} parent=75 // pred_fallthru
        _
    $region76: #{proj_head_forward.4} parent=5 // pred_fallthru
      _
  $region6: #{proj_head_forward.4} parent=0 // loop_footer
    %s19 = sadd.s32 1, %s15
  $region7: #{proj_head_forward.4} parent=0 // loop_footer_branch
    %14 = sbr.rel target = $region3
  $region8: #{proj_head_forward.4} parent=0 // loop_exit
    _

// kernel: proj_head_forward.3
$region0: #{proj_head_forward.3}
  #allocation0 [shape = 'u32[]', space=smem, size = 0x4, offset = 0x4, fixed_abs, tag = 'smem constant byte address 0x4 - core index']
  #allocation1 [shape = 'u32[72,128]{1,0:T(1,128)}', space=vmem, size = 0x9000, scoped, tag = 'internal scratch']
  %s0 = inlined_call_operand.vmem [shape: bf16[64,128], index: 0, kind: input, shape index: {}]
  %s1 = inlined_call_operand.hbm [shape: bf16[128,128], index: 1, kind: input, shape index: {}]
  %s2 = inlined_call_operand.hbm [shape: f32[1,128], index: 2, kind: input, shape index: {}]
  %s3 = inlined_call_operand.hbm [shape: f32[1,128], index: 3, kind: input, shape index: {}]
  %s4 = inlined_call_operand.vmem [shape: bf16[64,128], index: 4, kind: output, shape index: {0}]
  %s5 = inlined_call_operand.vmem [shape: f32[1,128], index: 5, kind: output, shape index: {1}]
  %s6 = inlined_call_operand.vmem [shape: f32[1,128], index: 6, kind: output, shape index: {2}]
  %7 = xla_tuple %s4, %s5, %s6
  %s8 = sld [smem:[#allocation0]]
  $region85: #{proj_head_forward.3} parent=0
    _
  %s10 = ssub.s32 1, %s8
  %s11 = scalar_select 0, %s10, %s8
  $region1: #{proj_head_forward.3} parent=0
    #allocation2 [shape = 'u8[32768]{0}', space=vmem, size = 0x8000, scoped, tag = 'input window, operand 1, single buffered']
    #allocation3 [shape = 's32[2]{0}', space=sflag, size = 0x8, scoped, tag = 'scoped memory for proj_head_forward.3']
    #allocation4 [shape = 'u8[512]{0}', space=vmem, size = 0x400, scoped, tag = 'input window, operand 2, single buffered']
    #allocation5 [shape = 's32[1]{0}', space=sflag, size = 0x4, scoped, tag = 'scoped memory for proj_head_forward.3']
    #allocation6 [shape = 'u8[512]{0}', space=vmem, size = 0x400, scoped, tag = 'input window, operand 3, single buffered']
    %12 = vsyncpa [#allocation3], 0
    %13 = vsyncpa [#allocation5], 0
    loop: start=0, step=1, limit=6
    $region2: #{proj_head_forward.3} parent=1 // loop_pre_header
      _
    $region3: #{proj_head_forward.3} parent=1 // loop_header
      %s15 = sphi 0, %s19
      %p16 = scmp.ge.s32.totalorder %s15, 6
      %s25 = sphi 0, %s27
      %s28 = sphi 0, %s25
      %s29 = sphi 0, %s28
      %s45 = sphi 0, %s29
      %s49 = sphi 0, %s49
      %s51 = sphi 0, %s49
      %s52 = sphi 0, %s51
      %s66 = sphi 0, %s52
      %s70 = sphi 0, %s70
      %s72 = sphi 0, %s70
      %s73 = sphi 0, %s72
      %s87 = sphi 0, %s73
      %s91 = sphi 0, %s91
      %s93 = sphi 0, %s91
      %s94 = sphi 0, %s93
      %s108 = sphi 0, %s94
      %s114 = sphi 0, %s116
      %s117 = sphi 0, %s114
      %s118 = sphi 0, %s117
      %s134 = sphi 0, %s118
      %s138 = sphi 0, %s138
      %s140 = sphi 0, %s138
      %s141 = sphi 0, %s140
      %s155 = sphi 0, %s141
      %s159 = sphi 0, %s159
      %s161 = sphi 0, %s159
      %s162 = sphi 0, %s161
      %s176 = sphi 0, %s162
    $region4: #{proj_head_forward.3} parent=1 // loop_header_branch
      %18 = sbr.rel (%p16) target = $region8
    $region5: #{proj_head_forward.3} parent=1 // loop_body
      %s20 = ssub.s32 %s15, 1
      %s21 = ssub.s32 %s15, 2
      %s22 = sadd.s32 %s15, 1
      %s23 = ssub.s32 %s15, %s22
      %p24 = scmp.eq.s32.totalorder %s23, 0
      %s26 = sadd.s32 %s25, 1
      %s27 = scalar_select %p24, %s25, %s26
      %p30 = pneg %p24
      %p31 = scmp.eq.s32.totalorder %s15, 3
      %p32 = por %p30, %p31
      %p33 = scmp.ne.s32.totalorder %s25, %s28
      %p34 = scmp.eq.s32.totalorder %s15, 0
      %p35 = por %p33, %p34
      %p36 = scmp.ne.s32.totalorder %s25, %s28
      %p37 = scmp.eq.s32.totalorder %s20, 3
      %p38 = por %p36, %p37
      %p39 = scmp.ne.s32.totalorder %s28, %s29
      %p40 = scmp.eq.s32.totalorder %s20, 0
      %p41 = por %p39, %p40
      %p42 = scmp.ne.s32.totalorder %s28, %s29
      %p43 = scmp.eq.s32.totalorder %s21, 3
      %p44 = por %p42, %p43
      %p46 = scmp.ne.s32.totalorder %s29, %s45
      %p47 = scmp.eq.s32.totalorder %s21, 0
      %p48 = por %p46, %p47
      %s50 = sadd.s32 %s49, 1
      %p53 = scmp.eq.s32.totalorder %s15, 3
      %p54 = scmp.ne.s32.totalorder %s49, %s51
      %p55 = scmp.eq.s32.totalorder %s15, 0
      %p56 = por %p54, %p55
      %p57 = scmp.ne.s32.totalorder %s49, %s51
      %p58 = scmp.eq.s32.totalorder %s20, 3
      %p59 = por %p57, %p58
      %p60 = scmp.ne.s32.totalorder %s51, %s52
      %p61 = scmp.eq.s32.totalorder %s20, 0
      %p62 = por %p60, %p61
      %p63 = scmp.ne.s32.totalorder %s51, %s52
      %p64 = scmp.eq.s32.totalorder %s21, 3
      %p65 = por %p63, %p64
      %p67 = scmp.ne.s32.totalorder %s52, %s66
      %p68 = scmp.eq.s32.totalorder %s21, 0
      %p69 = por %p67, %p68
      %s71 = sadd.s32 %s70, 1
      %p74 = scmp.eq.s32.totalorder %s15, 3
      %p75 = scmp.ne.s32.totalorder %s70, %s72
      %p76 = scmp.eq.s32.totalorder %s15, 0
      %p77 = por %p75, %p76
      %p78 = scmp.ne.s32.totalorder %s70, %s72
      %p79 = scmp.eq.s32.totalorder %s20, 3
      %p80 = por %p78, %p79
      %p81 = scmp.ne.s32.totalorder %s72, %s73
      %p82 = scmp.eq.s32.totalorder %s20, 0
      %p83 = por %p81, %p82
      %p84 = scmp.ne.s32.totalorder %s72, %s73
      %p85 = scmp.eq.s32.totalorder %s21, 3
      %p86 = por %p84, %p85
      %p88 = scmp.ne.s32.totalorder %s73, %s87
      %p89 = scmp.eq.s32.totalorder %s21, 0
      %p90 = por %p88, %p89
      %s92 = sadd.s32 %s91, 1
      %p95 = scmp.eq.s32.totalorder %s15, 3
      %p96 = scmp.ne.s32.totalorder %s91, %s93
      %p97 = scmp.eq.s32.totalorder %s15, 0
      %p98 = por %p96, %p97
      %p99 = scmp.ne.s32.totalorder %s91, %s93
      %p100 = scmp.eq.s32.totalorder %s20, 3
      %p101 = por %p99, %p100
      %p102 = scmp.ne.s32.totalorder %s93, %s94
      %p103 = scmp.eq.s32.totalorder %s20, 0
      %p104 = por %p102, %p103
      %p105 = scmp.ne.s32.totalorder %s93, %s94
      %p106 = scmp.eq.s32.totalorder %s21, 3
      %p107 = por %p105, %p106
      %p109 = scmp.ne.s32.totalorder %s94, %s108
      %p110 = scmp.eq.s32.totalorder %s21, 0
      %p111 = por %p109, %p110
      %s112 = ssub.s32 %s15, %s22
      %p113 = scmp.eq.s32.totalorder %s112, 0
      %s115 = sadd.s32 %s114, 1
      %s116 = scalar_select %p113, %s114, %s115
      %p119 = pneg %p113
      %p120 = scmp.eq.s32.totalorder %s15, 3
      %p121 = por %p119, %p120
      %p122 = scmp.ne.s32.totalorder %s114, %s117
      %p123 = scmp.eq.s32.totalorder %s15, 0
      %p124 = por %p122, %p123
      %p125 = scmp.ne.s32.totalorder %s114, %s117
      %p126 = scmp.eq.s32.totalorder %s20, 3
      %p127 = por %p125, %p126
      %p128 = scmp.ne.s32.totalorder %s117, %s118
      %p129 = scmp.eq.s32.totalorder %s20, 0
      %p130 = por %p128, %p129
      %p131 = scmp.ne.s32.totalorder %s117, %s118
      %p132 = scmp.eq.s32.totalorder %s21, 3
      %p133 = por %p131, %p132
      %p135 = scmp.ne.s32.totalorder %s118, %s134
      %p136 = scmp.eq.s32.totalorder %s21, 0
      %p137 = por %p135, %p136
      %s139 = sadd.s32 %s138, 1
      %p142 = scmp.eq.s32.totalorder %s15, 3
      %p143 = scmp.ne.s32.totalorder %s138, %s140
      %p144 = scmp.eq.s32.totalorder %s15, 0
      %p145 = por %p143, %p144
      %p146 = scmp.ne.s32.totalorder %s138, %s140
      %p147 = scmp.eq.s32.totalorder %s20, 3
      %p148 = por %p146, %p147
      %p149 = scmp.ne.s32.totalorder %s140, %s141
      %p150 = scmp.eq.s32.totalorder %s20, 0
      %p151 = por %p149, %p150
      %p152 = scmp.ne.s32.totalorder %s140, %s141
      %p153 = scmp.eq.s32.totalorder %s21, 3
      %p154 = por %p152, %p153
      %p156 = scmp.ne.s32.totalorder %s141, %s155
      %p157 = scmp.eq.s32.totalorder %s21, 0
      %p158 = por %p156, %p157
      %s160 = sadd.s32 %s159, 1
      %p163 = scmp.eq.s32.totalorder %s15, 3
      %p164 = scmp.ne.s32.totalorder %s159, %s161
      %p165 = scmp.eq.s32.totalorder %s15, 0
      %p166 = por %p164, %p165
      %p167 = scmp.ne.s32.totalorder %s159, %s161
      %p168 = scmp.eq.s32.totalorder %s20, 3
      %p169 = por %p167, %p168
      %p170 = scmp.ne.s32.totalorder %s161, %s162
      %p171 = scmp.eq.s32.totalorder %s20, 0
      %p172 = por %p170, %p171
      %p173 = scmp.ne.s32.totalorder %s161, %s162
      %p174 = scmp.eq.s32.totalorder %s21, 3
      %p175 = por %p173, %p174
      %p177 = scmp.ne.s32.totalorder %s162, %s176
      %p178 = scmp.eq.s32.totalorder %s21, 0
      %p179 = por %p177, %p178
      %p180 = scmp.le.s32.totalorder 1, %s15
      %p181 = scmp.lt.s32.totalorder %s15, 5
      %p182 = pnand %p180, %p181
      %p183 = pneg %p182
      // Predicated region
      $region9: #{proj_head_forward.3} parent=5 // pred_check
        _
      $region10: #{proj_head_forward.3} parent=5 // pred_check_branch
        %185 = sbr.rel (%p182) target = $region12
      $region11: #{proj_head_forward.3} parent=5 // pred_region
        %s186 = ssub.s32 %s15, 1
        // Predicated region
        $region13: #{proj_head_forward.3} parent=11 // pred_check
          %p187 = pneg %p62
        $region14: #{proj_head_forward.3} parent=11 // pred_check_branch
          %189 = sbr.rel (%p187) target = $region16
        $region15: #{proj_head_forward.3} parent=11 // pred_region
          %191 = vsyncadd [#allocation3], 0
          %s192 = sshll.u32 %s1, 4
          %s193 = int_to_ptr.hbm [resolvable:$true] %s192
          %s194 = sshll.u32 [#allocation2], 4
          %s195 = int_to_ptr.vmem [resolvable:$true] %s194
          %200 = dma.hbm_to_vmem [thread:$0]  %s193, 1024, %s195, [#allocation3], 64, 64, 4
        $region16: #{proj_head_forward.3} parent=11 // pred_fallthru
          _
        // Predicated region
        $region17: #{proj_head_forward.3} parent=11 // pred_check
          %p201 = pneg %p83
        $region18: #{proj_head_forward.3} parent=11 // pred_check_branch
          %203 = sbr.rel (%p201) target = $region20
        $region19: #{proj_head_forward.3} parent=11 // pred_region
          %205 = vsyncadd [#allocation5], 0
          %s207 = sshll.u32 %s2, 4
          %s208 = int_to_ptr.hbm [resolvable:$true] %s207
          %s209 = sshll.u32 [#allocation4], 4
          %s210 = int_to_ptr.vmem [resolvable:$true] %s209
          %212 = dma.hbm_to_vmem [thread:$0]  %s208, 16, %s210, [#allocation5]
        $region20: #{proj_head_forward.3} parent=11 // pred_fallthru
          _
        // Predicated region
        $region21: #{proj_head_forward.3} parent=11 // pred_check
          %p213 = pneg %p104
        $region22: #{proj_head_forward.3} parent=11 // pred_check_branch
          %215 = sbr.rel (%p213) target = $region24
        $region23: #{proj_head_forward.3} parent=11 // pred_region
          %217 = vsyncadd [#allocation5], 0
          %s219 = sshll.u32 %s3, 4
          %s220 = int_to_ptr.hbm [resolvable:$true] %s219
          %s221 = sshll.u32 [#allocation6], 4
          %s222 = int_to_ptr.vmem [resolvable:$true] %s221
          %224 = dma.hbm_to_vmem [thread:$0]  %s220, 16, %s222, [#allocation5]
        $region24: #{proj_head_forward.3} parent=11 // pred_fallthru
          _
      $region12: #{proj_head_forward.3} parent=5 // pred_fallthru
        _
      %p225 = scmp.lt.s32.totalorder %s15, 4
      // Predicated region
      $region25: #{proj_head_forward.3} parent=5 // pred_check
        %p226 = pneg %p225
      $region26: #{proj_head_forward.3} parent=5 // pred_check_branch
        %228 = sbr.rel (%p226) target = $region28
      $region27: #{proj_head_forward.3} parent=5 // pred_region
        // Predicated region
        $region29: #{proj_head_forward.3} parent=27 // pred_check
          %p229 = pneg %p35
        $region30: #{proj_head_forward.3} parent=27 // pred_check_branch
          %231 = sbr.rel (%p229) target = $region32
        $region31: #{proj_head_forward.3} parent=27 // pred_region
          %s232 = smul.u32 2, %s15
          %p233 = scmp.lt.s32.totalorder %s232, 7
          %s234 = scalar_select %p233, %s232, 7
          %s235 = smul.addr %s234, 4
          %s236 = scalar_lea.vmem %s0, %s235
          %s237 = smul.u32 2, %s15
        $region32: #{proj_head_forward.3} parent=27 // pred_fallthru
          _
      $region28: #{proj_head_forward.3} parent=5 // pred_fallthru
        _
      %p238 = scmp.le.s32.totalorder 1, %s15
      %p239 = scmp.lt.s32.totalorder %s15, 5
      %p240 = pnand %p238, %p239
      %p241 = pneg %p240
      // Predicated region
      $region33: #{proj_head_forward.3} parent=5 // pred_check
        _
      $region34: #{proj_head_forward.3} parent=5 // pred_check_branch
        %243 = sbr.rel (%p240) target = $region36
      $region35: #{proj_head_forward.3} parent=5 // pred_region
        %s244 = ssub.s32 %s15, 1
        // Predicated region
        $region37: #{proj_head_forward.3} parent=35 // pred_check
          %p245 = pneg %p62
        $region38: #{proj_head_forward.3} parent=35 // pred_check_branch
          %247 = sbr.rel (%p245) target = $region40
        $region39: #{proj_head_forward.3} parent=35 // pred_region
          %249 = dma.done [#allocation3], 1024
        $region40: #{proj_head_forward.3} parent=35 // pred_fallthru
          _
        // Predicated region
        $region41: #{proj_head_forward.3} parent=35 // pred_check
          %p250 = pneg %p83
        $region42: #{proj_head_forward.3} parent=35 // pred_check_branch
          %252 = sbr.rel (%p250) target = $region44
        $region43: #{proj_head_forward.3} parent=35 // pred_region
          %254 = dma.done [#allocation5], 16
        $region44: #{proj_head_forward.3} parent=35 // pred_fallthru
          _
        // Predicated region
        $region45: #{proj_head_forward.3} parent=35 // pred_check
          %p255 = pneg %p104
        $region46: #{proj_head_forward.3} parent=35 // pred_check_branch
          %257 = sbr.rel (%p255) target = $region48
        $region47: #{proj_head_forward.3} parent=35 // pred_region
          %259 = dma.done [#allocation5], 16
        $region48: #{proj_head_forward.3} parent=35 // pred_fallthru
          _
        %s260 = smul.u32 2, %s20
        %p261 = scmp.lt.s32.totalorder %s260, 7
        %s262 = scalar_select %p261, %s260, 7
        %s263 = smul.addr %s262, 4
        %s264 = scalar_lea.vmem %s0, %s263
        %p265 = pneg %p41
        %p266 = pneg %p38
        %p267 = pneg %p62
        %p268 = pneg %p59
        %p269 = pneg %p83
        %p270 = pneg %p80
        %p271 = pneg %p104
        %p272 = pneg %p101
        %p273 = pneg %p130
        %p274 = pneg %p127
        %s275 = smul.u32 2, %s20
        %p276 = scmp.lt.s32.totalorder %s275, 7
        %s277 = scalar_select %p276, %s275, 7
        %s278 = smul.addr %s277, 4
        %s279 = scalar_lea.vmem %s4, %s278
        %p280 = pneg %p151
        %p281 = pneg %p148
        %p282 = pneg %p172
        %p283 = pneg %p169
        %s284 = smul.u32 2, %s20
        %p285 = scmp.lt.s32.totalorder %s284, 7
        %s286 = scalar_select %p285, %s284, 7
        %s287 = smul.addr %s286, 4
        %s288 = scalar_lea.vmem %s0, %s287
        %s289 = smul.u32 2, %s20
        %s290 = smul.u32 2, %s20
        %p291 = scmp.lt.s32.totalorder %s290, 7
        %s292 = scalar_select %p291, %s290, 7
        %s293 = smul.addr %s292, 4
        %s294 = scalar_lea.vmem %s4, %s293
        %s295 = smul.u32 2, %s20
        %p296 = scmp.eq.s32.totalorder %s20, 0
        // Predicated region
        $region49: #{proj_head_forward.3} parent=35 // pred_check
          %p297 = pneg %p296
        $region50: #{proj_head_forward.3} parent=35 // pred_check_branch
          %299 = sbr.rel (%p297) target = $region52
        $region51: #{proj_head_forward.3} parent=35 // pred_region
          %300 = vst [vmem:[%s5] sm:$0x1] 0.0
          %301 = vst [vmem:[%s6] sm:$0x1] 0.0
        $region52: #{proj_head_forward.3} parent=35 // pred_fallthru
          _
        %v302 = vld [vmem:[%s288] sm:$0xf]
        %v303 = vld [vmem:[%s288 + $0x4] sm:$0xf]
        %v304 = vld [vmem:[#allocation2] sm:$0xf]
        %v305 = vld [vmem:[#allocation2 + $0x4] sm:$0xf]
        %v306 = vld [vmem:[#allocation2 + $0x8] sm:$0xf]
        %v307 = vld [vmem:[#allocation2 + $0xc] sm:$0xf]
        %v308 = vld [vmem:[#allocation2 + $0x10] sm:$0xf]
        %v309 = vld [vmem:[#allocation2 + $0x14] sm:$0xf]
        %v310 = vld [vmem:[#allocation2 + $0x18] sm:$0xf]
        %v311 = vld [vmem:[#allocation2 + $0x1c] sm:$0xf]
        %v312 = vld [vmem:[#allocation2 + $0x20] sm:$0xf]
        %v313 = vld [vmem:[#allocation2 + $0x24] sm:$0xf]
        %v314 = vld [vmem:[#allocation2 + $0x28] sm:$0xf]
        %v315 = vld [vmem:[#allocation2 + $0x2c] sm:$0xf]
        %v316 = vld [vmem:[#allocation2 + $0x30] sm:$0xf]
        %v317 = vld [vmem:[#allocation2 + $0x34] sm:$0xf]
        %v318 = vld [vmem:[#allocation2 + $0x38] sm:$0xf]
        %v319 = vld [vmem:[#allocation2 + $0x3c] sm:$0xf]
        %v322 = vunpack.c.l.b16 %v302
        %v323 = vunpack.c.l.b16 %v303
        %v324 = vpack.c.b16 %v323, %v322
        %v342 = vunpack.c.l.b16 %v304
        %v343 = vunpack.c.l.b16 %v305
        %v344 = vunpack.c.l.b16 %v306
        %v345 = vunpack.c.l.b16 %v307
        %v346 = vunpack.c.l.b16 %v308
        %v347 = vunpack.c.l.b16 %v309
        %v348 = vunpack.c.l.b16 %v310
        %v349 = vunpack.c.l.b16 %v311
        %v350 = vunpack.c.l.b16 %v312
        %v351 = vunpack.c.l.b16 %v313
        %v352 = vunpack.c.l.b16 %v314
        %v353 = vunpack.c.l.b16 %v315
        %v354 = vunpack.c.l.b16 %v316
        %v355 = vunpack.c.l.b16 %v317
        %v356 = vunpack.c.l.b16 %v318
        %v357 = vunpack.c.l.b16 %v319
        %v358 = vpack.c.b16 %v343, %v342
        %v359 = vpack.c.b16 %v345, %v344
        %v360 = vpack.c.b16 %v347, %v346
        %v361 = vpack.c.b16 %v349, %v348
        %v362 = vpack.c.b16 %v351, %v350
        %v363 = vpack.c.b16 %v353, %v352
        %v364 = vpack.c.b16 %v355, %v354
        %v365 = vpack.c.b16 %v357, %v356
        %374 = vmatpush.bf16.msra.mxu0 %v365
        %375 = vmatpush.bf16.msra.mxu0 %v364
        %376 = vmatpush.bf16.msra.mxu0 %v363
        %377 = vmatpush.bf16.msra.mxu0 %v362
        %378 = vmatpush.bf16.msra.mxu0 %v361
        %379 = vmatpush.bf16.msra.mxu0 %v360
        %380 = vmatpush.bf16.msra.mxu0 %v359
        %381 = vmatpush.bf16.msra.mxu0 %v358
        %382 = vmatmul.bf16.gmra.mxu0 %v324
        %v383 = vpop.f32.mrf.mxu0
        %v384 = vadd.f32 0.0, %v383
        %v385 = vpop.f32.mrf.mxu0
        %v386 = vadd.f32 0.0, %v385
        %387 = vdwg.mxu0
        %v388 = vpack.c.bf16 %v384, %v384
        %v389 = vpack.c.bf16 %v386, %v386
        %390 = vst [vmem:[%s294] sm:$0xf] %v388
        %391 = vst [vmem:[%s294 + $0x4] sm:$0xf] %v389
        %v392 = vld [vmem:[%s5] sm:$0x1]
        %v393 = vadd.f32 %v384, %v386
        %v394 = vrot.slane %v393, 4
        %v395 = vadd.f32 %v393, %v394
        %v396 = vrot.slane %v395, 2
        %v397 = vadd.f32 %v395, %v396
        %v398 = vrot.slane %v397, 1
        %v399 = vadd.f32 %v397, %v398
        %v400 = vadd.f32 %v392, %v399
        %401 = vst [vmem:[%s5] sm:$0x1] %v400
        %v402 = vld [vmem:[%s6] sm:$0x1]
        %v403 = vmul.f32 %v384, %v384
        %v404 = vmul.f32 %v386, %v386
        %v405 = vadd.f32 %v403, %v404
        %v406 = vrot.slane %v405, 4
        %v407 = vadd.f32 %v405, %v406
        %v408 = vrot.slane %v407, 2
        %v409 = vadd.f32 %v407, %v408
        %v410 = vrot.slane %v409, 1
        %v411 = vadd.f32 %v409, %v410
        %v412 = vadd.f32 %v402, %v411
        %413 = vst [vmem:[%s6] sm:$0x1] %v412
        %p414 = scmp.eq.s32.totalorder %s20, 3
        // Predicated region
        $region53: #{proj_head_forward.3} parent=35 // pred_check
          %p415 = pneg %p414
        $region54: #{proj_head_forward.3} parent=35 // pred_check_branch
          %417 = sbr.rel (%p415) target = $region56
        $region55: #{proj_head_forward.3} parent=35 // pred_region
          %v418 = vld [vmem:[%s5] sm:$0x1]
          %v419 = vld [vmem:[%s6] sm:$0x1]
          %v420 = vmul.f32 %v418, 0.015625
          %v421 = vmul.f32 %v419, 0.015625
          %v422 = vmul.f32 %v420, %v420
          %v423 = vsub.f32 %v421, %v422
          %v424 = vld [vmem:[#allocation4] sm:$0x1]
          %v425 = vadd.f32 %v423, 1e-05
          %v426 = vrsqrt.pop %v425
          %v427 = vmul.f32 %v426, %v425
          %v428 = vmul.f32 %v427, %v426
          %v429 = vmul.f32 0.5, %v428
          %v430 = vsub.f32 1.5, %v429
          %v431 = vmul.f32 %v426, %v430
          %vm432 = vweird.f32 %v425
          %vm433 = vweird.f32 %v426
          %vm434 = vmor %vm432, %vm433
          %v435 = vsel %vm434, %v426, %v431
          %v436 = vmul.f32 %v424, %v435
          %437 = vst [vmem:[%s5] sm:$0x1] %v436
          %v438 = vld [vmem:[#allocation6] sm:$0x1]
          %v439 = vmul.f32 %v420, %v436
          %v440 = vsub.f32 %v438, %v439
          %441 = vst [vmem:[%s6] sm:$0x1] %v440
        $region56: #{proj_head_forward.3} parent=35 // pred_fallthru
          _
        %s442 = smul.u32 2, %s20
        %p443 = scmp.lt.s32.totalorder %s442, 7
        %s444 = scalar_select %p443, %s442, 7
        %s445 = smul.addr %s444, 4
        %s446 = scalar_lea.vmem %s4, %s445
        // Predicated region
        $region57: #{proj_head_forward.3} parent=35 // pred_check
          %p447 = pneg %p127
        $region58: #{proj_head_forward.3} parent=35 // pred_check_branch
          %449 = sbr.rel (%p447) target = $region60
        $region59: #{proj_head_forward.3} parent=35 // pred_region
          %s450 = smul.u32 2, %s20
        $region60: #{proj_head_forward.3} parent=35 // pred_fallthru
          _
        // Predicated region
        $region61: #{proj_head_forward.3} parent=35 // pred_check
          %p451 = pneg %p148
        $region62: #{proj_head_forward.3} parent=35 // pred_check_branch
          %453 = sbr.rel (%p451) target = $region64
        $region63: #{proj_head_forward.3} parent=35 // pred_region
          _
        $region64: #{proj_head_forward.3} parent=35 // pred_fallthru
          _
        // Predicated region
        $region65: #{proj_head_forward.3} parent=35 // pred_check
          %p454 = pneg %p169
        $region66: #{proj_head_forward.3} parent=35 // pred_check_branch
          %456 = sbr.rel (%p454) target = $region68
        $region67: #{proj_head_forward.3} parent=35 // pred_region
          _
        $region68: #{proj_head_forward.3} parent=35 // pred_fallthru
          _
        // Predicated region
        $region69: #{proj_head_forward.3} parent=35 // pred_check
          %p457 = pneg %p148
        $region70: #{proj_head_forward.3} parent=35 // pred_check_branch
          %459 = sbr.rel (%p457) target = $region72
        $region71: #{proj_head_forward.3} parent=35 // pred_region
          _
        $region72: #{proj_head_forward.3} parent=35 // pred_fallthru
          _
        // Predicated region
        $region73: #{proj_head_forward.3} parent=35 // pred_check
          %p460 = pneg %p169
        $region74: #{proj_head_forward.3} parent=35 // pred_check_branch
          %462 = sbr.rel (%p460) target = $region76
        $region75: #{proj_head_forward.3} parent=35 // pred_region
          _
        $region76: #{proj_head_forward.3} parent=35 // pred_fallthru
          _
      $region36: #{proj_head_forward.3} parent=5 // pred_fallthru
        _
      %p463 = scmp.le.s32.totalorder 2, %s15
      // Predicated region
      $region77: #{proj_head_forward.3} parent=5 // pred_check
        %p464 = pneg %p463
      $region78: #{proj_head_forward.3} parent=5 // pred_check_branch
        %466 = sbr.rel (%p464) target = $region80
      $region79: #{proj_head_forward.3} parent=5 // pred_region
        %s467 = ssub.s32 %s15, 2
        // Predicated region
        $region81: #{proj_head_forward.3} parent=79 // pred_check
          %p468 = pneg %p133
        $region82: #{proj_head_forward.3} parent=79 // pred_check_branch
          %470 = sbr.rel (%p468) target = $region84
        $region83: #{proj_head_forward.3} parent=79 // pred_region
          %s471 = smul.u32 2, %s21
          %p472 = scmp.lt.s32.totalorder %s471, 7
          %s473 = scalar_select %p472, %s471, 7
          %s474 = smul.addr %s473, 4
          %s475 = scalar_lea.vmem %s4, %s474
        $region84: #{proj_head_forward.3} parent=79 // pred_fallthru
          _
      $region80: #{proj_head_forward.3} parent=5 // pred_fallthru
        _
    $region6: #{proj_head_forward.3} parent=1 // loop_footer
      %s19 = sadd.s32 1, %s15
    $region7: #{proj_head_forward.3} parent=1 // loop_footer_branch
      %14 = sbr.rel target = $region3
    $region8: #{proj_head_forward.3} parent=1 // loop_exit
      _
    %476 = vsyncpa [#allocation3], 1
    %s477 = scalar_lea.sflag [#allocation3], 1
    %478 = vsyncpa %s477, 1
    %479 = vsyncpa [#allocation5], 1

</llo_original>
